<compile_context>
chip_gen: v7x
topology: tpu7x:2x2x1
jax: 0.10.0
libtpu: 0.0.40
codegen_flags: <defaults>
</compile_context>

<pallas_src>
import jax
import jax.numpy as jnp
import numpy as np
from jax.experimental import pallas as pl
from jax.experimental.pallas import tpu as pltpu


# ---------------------------------------------------------------------------
# Spectral norm (SN.W_ with num_svs=1, num_itrs=1) -- parameter preparation.
# ---------------------------------------------------------------------------
def _sn_weight(w, u, eps=1e-12):
    # w: (out, in)   u: (1, out)
    v = u @ w                                           # (1, in)
    v = v / jnp.maximum(jnp.linalg.norm(v), eps)        # F.normalize
    u2 = v @ w.T                                        # (1, out)
    u2 = u2 / jnp.maximum(jnp.linalg.norm(u2), eps)
    sv = jnp.squeeze((v @ w.T) @ u2.T)                  # top singular value
    return w / sv


def _pick_block_batch(B, max_bt=8):
    """Largest batch-block <= max_bt that divides B, preferring an even grid."""
    cap = max(1, min(B, max_bt))
    divisors = [d for d in range(1, cap + 1) if B % d == 0]
    even_grid = [d for d in divisors if (B // d) % 2 == 0]
    return max(even_grid) if even_grid else max(divisors)


def _round_up(x, m):
    return ((x + m - 1) // m) * m


# ---------------------------------------------------------------------------
# Pallas kernel: `bt` batch elements per grid step, all corners fused into M.
# ---------------------------------------------------------------------------
def _attn_kernel(xc_ref, wqkg_ref, wo_ref, gamma_ref, out_ref):
    # xc_ref   : (Bt, 4, HW4, C)    bf16   corner layout
    # wqkg_ref : (C, Npad)          bf16   [theta | phi | g | 0-pad] fused 1x1 W
    # wo_ref   : (C//2, C)          bf16
    # gamma_ref: (1,)               f32    (SMEM scalar)
    # out_ref  : (Bt, 4, HW4, C)    f32
    bt, _, hw4, c = xc_ref.shape
    c8 = c // 8
    c2 = c // 2
    gamma = gamma_ref[0]

    x = xc_ref[...]                                      # (Bt, 4, HW4, C) bf16
    x_flat = x.reshape(bt * 4 * hw4, c)                  # M = Bt*4*HW4

    # --- fused theta/phi/g projections: one MXU pass over x -----------------
    proj = jnp.dot(x_flat, wqkg_ref[...],
                   preferred_element_type=jnp.float32)   # (M, Npad) f32
    proj = proj.reshape(bt, 4, hw4, proj.shape[-1])

    theta = proj[:, :, :, :c8].reshape(bt, 4 * hw4, c8)          # queries
    # 2x2 max-pool of conv1x1(x)  ==  max over the 4 corner projections
    phi_p = jnp.max(proj[:, :, :, c8:2 * c8], axis=1)            # (Bt, HW4, c8)
    g_p = jnp.max(proj[:, :, :, 2 * c8:2 * c8 + c2], axis=1)     # (Bt, HW4, c2)

    # --- attention logits + stable softmax over the pooled keys -------------
    logits = jnp.einsum("bqc,bpc->bqp",
                        theta.astype(jnp.bfloat16),
                        phi_p.astype(jnp.bfloat16),
                        preferred_element_type=jnp.float32)   # (Bt, 4*HW4, HW4)
    m = jnp.max(logits, axis=-1, keepdims=True)
    e = jnp.exp(logits - m)
    denom = jnp.sum(e, axis=-1, keepdims=True)

    # PV matmul on the UNnormalized weights, normalization folded in after.
    o_un = jnp.einsum("bqp,bpc->bqc",
                      e.astype(jnp.bfloat16),
                      g_p.astype(jnp.bfloat16),
                      preferred_element_type=jnp.float32)     # (Bt, 4*HW4, c2)
    o_mid = o_un * pl.reciprocal(denom, approx=True)

    # --- output 1x1 conv + gamma-scaled residual, single fused store --------
    o = jnp.dot(o_mid.reshape(bt * 4 * hw4, c2).astype(jnp.bfloat16),
                wo_ref[...],
                preferred_element_type=jnp.float32)           # (M, C)
    out = gamma * o + x_flat.astype(jnp.float32)
    out_ref[...] = out.reshape(bt, 4, hw4, c)


# ---------------------------------------------------------------------------
# Wrapper: layout glue + pallas_call.
# ---------------------------------------------------------------------------
def attention_pallas(x, params, *, max_batch_per_step=8):
    # x: (B, C, H, W) float32 (NCHW, matching the PyTorch module)
    B, C, H, W = x.shape
    assert H % 2 == 0 and W % 2 == 0 and C % 8 == 0
    c8, c2 = C // 8, C // 2
    HW4 = (H * W) // 4

    wth = _sn_weight(params["w_theta"], params["u_theta"])   # (c8, C)
    wphi = _sn_weight(params["w_phi"], params["u_phi"])      # (c8, C)
    wg = _sn_weight(params["w_g"], params["u_g"])            # (c2, C)
    wo = _sn_weight(params["w_o"], params["u_o"])            # (C,  c2)

    # Fused projection weight: x @ wqkg -> [theta | phi | g], lane-padded so
    # the projection matmul output occupies full 128-lane vregs (no masking).
    n_fused = 2 * c8 + c2
    n_pad = _round_up(n_fused, 128)
    wqkg = jnp.concatenate([wth.T, wphi.T, wg.T], axis=1)      # (C, n_fused)
    if n_pad > n_fused:
        wqkg = jnp.pad(wqkg, ((0, 0), (0, n_pad - n_fused)))
    wqkg = wqkg.astype(jnp.bfloat16)
    wo_t = wo.T.astype(jnp.bfloat16)                           # (c2, C)
    gamma = jnp.reshape(params["gamma"], (1,)).astype(jnp.float32)

    # NCHW -> corner layout (B, 4, HW/4, C); bf16 for the MXU (halves DMA/VMEM)
    x_hwc = jnp.transpose(x, (0, 2, 3, 1))
    xc = (x_hwc.reshape(B, H // 2, 2, W // 2, 2, C)
               .transpose(0, 2, 4, 1, 3, 5)
               .reshape(B, 4, HW4, C)).astype(jnp.bfloat16)

    bt = _pick_block_batch(B, max_batch_per_step)
    grid = (B // bt,)

    out_c = pl.pallas_call(
        _attn_kernel,
        out_shape=jax.ShapeDtypeStruct((B, 4, HW4, C), jnp.float32),
        grid=grid,
        in_specs=[
            pl.BlockSpec((bt, 4, HW4, C), lambda b: (b, 0, 0, 0)),
            pl.BlockSpec((C, n_pad), lambda b: (0, 0)),
            pl.BlockSpec((c2, C), lambda b: (0, 0)),
            pl.BlockSpec(memory_space=pltpu.MemorySpace.SMEM),   # gamma scalar
        ],
        out_specs=pl.BlockSpec((bt, 4, HW4, C), lambda b: (b, 0, 0, 0)),
        compiler_params=pltpu.CompilerParams(
            dimension_semantics=("parallel",)),
    )(xc, wqkg, wo_t, gamma)

    # corner layout -> NCHW
    out_hwc = (out_c.reshape(B, 2, 2, H // 2, W // 2, C)
                    .transpose(0, 3, 1, 4, 2, 5)
                    .reshape(B, H, W, C))
    return jnp.transpose(out_hwc, (0, 3, 1, 2))


# ---------------------------------------------------------------------------
# Plain-JAX reference (mirrors the PyTorch forward) for the correctness check.
# ---------------------------------------------------------------------------
def attention_reference(x, params):
    B, C, H, W = x.shape
    hi = jax.lax.Precision.HIGHEST
    wth = _sn_weight(params["w_theta"], params["u_theta"])
    wphi = _sn_weight(params["w_phi"], params["u_phi"])
    wg = _sn_weight(params["w_g"], params["u_g"])
    wo = _sn_weight(params["w_o"], params["u_o"])
    gamma = params["gamma"]

    def conv1x1(inp, w):
        return jnp.einsum("oc,bchw->bohw", w, inp, precision=hi)

    def pool2x2(t):
        b, c, h, w = t.shape
        return jnp.max(t.reshape(b, c, h // 2, 2, w // 2, 2), axis=(3, 5))

    theta = conv1x1(x, wth).reshape(B, C // 8, H * W)
    phi = pool2x2(conv1x1(x, wphi)).reshape(B, C // 8, H * W // 4)
    g = pool2x2(conv1x1(x, wg)).reshape(B, C // 2, H * W // 4)
    beta = jax.nn.softmax(
        jnp.einsum("bcq,bcp->bqp", theta, phi, precision=hi), axis=-1)
    o_mid = jnp.einsum("bcp,bqp->bcq", g, beta, precision=hi).reshape(B, C // 2, H, W)
    o = conv1x1(o_mid, wo)
    return gamma * o + x


# ---------------------------------------------------------------------------
if __name__ == "__main__":
    B, ch, H, W = 2, 128, 16, 16            # C=128 -> lane-dense loads/stores
    c8, c2 = ch // 8, ch // 2

    key = jax.random.PRNGKey(0)
    ks = jax.random.split(key, 10)
    params = {
        "w_theta": jax.random.normal(ks[0], (c8, ch), jnp.float32),
        "w_phi":   jax.random.normal(ks[1], (c8, ch), jnp.float32),
        "w_g":     jax.random.normal(ks[2], (c2, ch), jnp.float32),
        "w_o":     jax.random.normal(ks[3], (ch, c2), jnp.float32),
        "u_theta": jax.random.normal(ks[4], (1, c8), jnp.float32),
        "u_phi":   jax.random.normal(ks[5], (1, c8), jnp.float32),
        "u_g":     jax.random.normal(ks[6], (1, c2), jnp.float32),
        "u_o":     jax.random.normal(ks[7], (1, ch), jnp.float32),
        # PyTorch __init__ sets gamma = 0.0; use a nonzero value so the
        # attention branch is actually exercised numerically.
        "gamma":   jnp.float32(0.75),
    }

    x = jax.random.normal(ks[8], (B, ch, H, W), jnp.float32)

    out = attention_pallas(x, params)
    out = jax.block_until_ready(out)

    ref = attention_reference(x, params)
    # Kernel feeds the MXU bf16 operands (f32 accumulation); reference runs in
    # full f32 HIGHEST precision, hence the relaxed tolerance. Structural bugs
    # (wrong pooling / softmax axis / layout) would produce O(1) errors.
    np.testing.assert_allclose(np.asarray(out), np.asarray(ref),
                               rtol=5e-2, atol=5e-2)

    print("KERNEL_OK")
</pallas_src>

<mosaic_0001>
module attributes {stable_mosaic.version = 11 : i64} {
  func.func @_attn_kernel(%arg0: i32, %arg1: memref<1x4x64x128xbf16, #tpu.memory_space<vmem>>, %arg2: memref<128x128xbf16, #tpu.memory_space<vmem>>, %arg3: memref<64x128xbf16, #tpu.memory_space<vmem>>, %arg4: memref<1xf32, #tpu.memory_space<smem>>, %arg5: memref<1x4x64x128xf32, #tpu.memory_space<vmem>>) attributes {dimension_semantics = [#tpu.dimension_semantics<parallel>], iteration_bounds = array<i64: 2>, scalar_prefetch = 0 : i64, scratch_operands = 0 : i64, tpu.core_type = #tpu.core_type<tc>, window_params = [{transform_indices = @transform_0, window_bounds = array<i64: 1, 4, 64, 128>}, {pipeline_mode = #tpu.pipeline_mode<synchronous>, transform_indices = @transform_1, window_bounds = array<i64: 128, 128>}, {pipeline_mode = #tpu.pipeline_mode<synchronous>, transform_indices = @transform_2, window_bounds = array<i64: 64, 128>}, {transform_indices = @transform_3, window_bounds = array<i64: 1>}, {transform_indices = @transform_4, window_bounds = array<i64: 1, 4, 64, 128>}]} {
    %c0 = arith.constant 0 : index
    %0 = memref.load %arg4[%c0] : memref<1xf32, #tpu.memory_space<smem>>
    %c0_0 = arith.constant 0 : index
    %c0_1 = arith.constant 0 : index
    %c0_2 = arith.constant 0 : index
    %c0_3 = arith.constant 0 : index
    %1 = vector.load %arg1[%c0_0, %c0_1, %c0_2, %c0_3] : memref<1x4x64x128xbf16, #tpu.memory_space<vmem>>, vector<1x4x64x128xbf16>
    %2 = vector.shape_cast %1 : vector<1x4x64x128xbf16> to vector<256x128xbf16>
    %c0_4 = arith.constant 0 : index
    %c0_5 = arith.constant 0 : index
    %3 = vector.load %arg2[%c0_4, %c0_5] : memref<128x128xbf16, #tpu.memory_space<vmem>>, vector<128x128xbf16>
    %cst = arith.constant dense<0.000000e+00> : vector<256x128xf32>
    %4 = tpu.matmul %2, %3, %cst {dimension_numbers = #tpu.dot_dimension_numbers<[1], [0], [0], [1], [0, 0, 1, 1], [], []>} : vector<256x128xbf16>, vector<128x128xbf16>, vector<256x128xf32> -> vector<256x128xf32>
    %5 = vector.shape_cast %4 : vector<256x128xf32> to vector<1x4x64x128xf32>
    %6 = vector.extract_strided_slice %5 {offsets = [0, 0, 0, 0], sizes = [1, 4, 64, 16], strides = [1, 1, 1, 1]} : vector<1x4x64x128xf32> to vector<1x4x64x16xf32>
    %7 = vector.shape_cast %6 : vector<1x4x64x16xf32> to vector<1x256x16xf32>
    %8 = vector.extract_strided_slice %5 {offsets = [0, 0, 0, 16], sizes = [1, 4, 64, 16], strides = [1, 1, 1, 1]} : vector<1x4x64x128xf32> to vector<1x4x64x16xf32>
    %cst_6 = arith.constant dense<0xFF800000> : vector<1x64x16xf32>
    %9 = vector.multi_reduction <maximumf>, %8, %cst_6 [1] : vector<1x4x64x16xf32> to vector<1x64x16xf32>
    %10 = vector.extract_strided_slice %5 {offsets = [0, 0, 0, 32], sizes = [1, 4, 64, 64], strides = [1, 1, 1, 1]} : vector<1x4x64x128xf32> to vector<1x4x64x64xf32>
    %cst_7 = arith.constant dense<0xFF800000> : vector<1x64x64xf32>
    %11 = vector.multi_reduction <maximumf>, %10, %cst_7 [1] : vector<1x4x64x64xf32> to vector<1x64x64xf32>
    %12 = arith.truncf %7 : vector<1x256x16xf32> to vector<1x256x16xbf16>
    %13 = arith.truncf %9 : vector<1x64x16xf32> to vector<1x64x16xbf16>
    "tpu.trace_start"() <{level = 10 : i32, message = "bqc,bpc->bqp"}> : () -> ()
    %cst_8 = arith.constant dense<0.000000e+00> : vector<1x256x64xf32>
    %14 = tpu.matmul %12, %13, %cst_8 {dimension_numbers = #tpu.dot_dimension_numbers<[2], [2], [1], [1], [0, 0, 0, 1, 1, 1], [0], [0]>} : vector<1x256x16xbf16>, vector<1x64x16xbf16>, vector<1x256x64xf32> -> vector<1x256x64xf32>
    "tpu.trace_stop"() : () -> ()
    %cst_9 = arith.constant dense<0xFF800000> : vector<1x256xf32>
    %15 = vector.multi_reduction <maximumf>, %14, %cst_9 [2] : vector<1x256x64xf32> to vector<1x256xf32>
    %16 = vector.shape_cast %15 : vector<1x256xf32> to vector<1x256x1xf32>
    %17 = vector.broadcast %16 : vector<1x256x1xf32> to vector<1x256x64xf32>
    %18 = arith.subf %14, %17 : vector<1x256x64xf32>
    %19 = math.exp %18 : vector<1x256x64xf32>
    %cst_10 = arith.constant dense<0.000000e+00> : vector<1x256xf32>
    %20 = vector.multi_reduction <add>, %19, %cst_10 [2] : vector<1x256x64xf32> to vector<1x256xf32>
    %21 = vector.shape_cast %20 : vector<1x256xf32> to vector<1x256x1xf32>
    %22 = arith.truncf %19 : vector<1x256x64xf32> to vector<1x256x64xbf16>
    %23 = arith.truncf %11 : vector<1x64x64xf32> to vector<1x64x64xbf16>
    "tpu.trace_start"() <{level = 10 : i32, message = "bqp,bpc->bqc"}> : () -> ()
    %cst_11 = arith.constant dense<0.000000e+00> : vector<1x256x64xf32>
    %24 = tpu.matmul %22, %23, %cst_11 {dimension_numbers = #tpu.dot_dimension_numbers<[2], [1], [1], [2], [0, 0, 0, 1, 1, 2], [0], [0]>} : vector<1x256x64xbf16>, vector<1x64x64xbf16>, vector<1x256x64xf32> -> vector<1x256x64xf32>
    "tpu.trace_stop"() : () -> ()
    %25 = tpu.reciprocal %21 {approx = true} : vector<1x256x1xf32> -> vector<1x256x1xf32>
    %26 = vector.broadcast %25 : vector<1x256x1xf32> to vector<1x256x64xf32>
    %27 = arith.mulf %24, %26 : vector<1x256x64xf32>
    %28 = vector.shape_cast %27 : vector<1x256x64xf32> to vector<256x64xf32>
    %29 = arith.truncf %28 : vector<256x64xf32> to vector<256x64xbf16>
    %c0_12 = arith.constant 0 : index
    %c0_13 = arith.constant 0 : index
    %30 = vector.load %arg3[%c0_12, %c0_13] : memref<64x128xbf16, #tpu.memory_space<vmem>>, vector<64x128xbf16>
    %cst_14 = arith.constant dense<0.000000e+00> : vector<256x128xf32>
    %31 = tpu.matmul %29, %30, %cst_14 {dimension_numbers = #tpu.dot_dimension_numbers<[1], [0], [0], [1], [0, 0, 1, 1], [], []>} : vector<256x64xbf16>, vector<64x128xbf16>, vector<256x128xf32> -> vector<256x128xf32>
    %32 = vector.broadcast %0 : f32 to vector<256x128xf32>
    %33 = arith.mulf %32, %31 : vector<256x128xf32>
    %34 = arith.extf %2 : vector<256x128xbf16> to vector<256x128xf32>
    %35 = arith.addf %33, %34 : vector<256x128xf32>
    %36 = vector.shape_cast %35 : vector<256x128xf32> to vector<1x4x64x128xf32>
    %c0_15 = arith.constant 0 : index
    %c0_16 = arith.constant 0 : index
    %c0_17 = arith.constant 0 : index
    %c0_18 = arith.constant 0 : index
    %37 = vector.load %arg5[%c0_15, %c0_16, %c0_17, %c0_18] : memref<1x4x64x128xf32, #tpu.memory_space<vmem>>, vector<1x4x64x128xf32>
    tpu.vector_store %arg5[%c0_15, %c0_16, %c0_17, %c0_18], %36 {strides = array<i32>} : memref<1x4x64x128xf32, #tpu.memory_space<vmem>>, vector<1x4x64x128xf32>,
    return
  }
  func.func @transform_0(%arg0: i32) -> (i32, i32, i32, i32) {
    %c0_i32 = arith.constant 0 : i32
    %c0_i32_0 = arith.constant 0 : i32
    %c0_i32_1 = arith.constant 0 : i32
    %c0_i32_2 = arith.constant 0 : i32
    return %arg0, %c0_i32, %c0_i32_0, %c0_i32_1 : i32, i32, i32, i32
  }
  func.func @transform_1(%arg0: i32) -> (i32, i32) {
    %c0_i32 = arith.constant 0 : i32
    %c0_i32_0 = arith.constant 0 : i32
    %c0_i32_1 = arith.constant 0 : i32
    return %c0_i32, %c0_i32_0 : i32, i32
  }
  func.func @transform_2(%arg0: i32) -> (i32, i32) {
    %c0_i32 = arith.constant 0 : i32
    %c0_i32_0 = arith.constant 0 : i32
    %c0_i32_1 = arith.constant 0 : i32
    return %c0_i32, %c0_i32_0 : i32, i32
  }
  func.func @transform_3(%arg0: i32) -> i32 {
    %c0_i32 = arith.constant 0 : i32
    %c0_i32_0 = arith.constant 0 : i32
    return %c0_i32 : i32
  }
  func.func @transform_4(%arg0: i32) -> (i32, i32, i32, i32) {
    %c0_i32 = arith.constant 0 : i32
    %c0_i32_0 = arith.constant 0 : i32
    %c0_i32_1 = arith.constant 0 : i32
    %c0_i32_2 = arith.constant 0 : i32
    return %arg0, %c0_i32, %c0_i32_0, %c0_i32_1 : i32, i32, i32, i32
  }
}

</mosaic_0001>

<llo_original>
// kernel: tpu_custom_call.1
$region0: #{tpu_custom_call.1}
  #allocation0 [shape = 'u32[]', space=smem, size = 0x4, offset = 0x4, fixed_abs, tag = 'smem constant byte address 0x4 - core index']
  #allocation1 [shape = 'u32[144,128]{1,0:T(1,128)}', space=vmem, size = 0x12000, scoped, tag = 'internal scratch']
  #allocation2 [shape = 'f32[1]{0:T(128)S(6)}', space=smem, size = 0x200, scoped, tag = 'scoped memory for tpu_custom_call.1']
  %s0 = inlined_call_operand.hbm [shape: bf16[2,4,64,128], index: 0, kind: input, shape index: {}]
  %s1 = inlined_call_operand.hbm [shape: bf16[128,128], index: 1, kind: input, shape index: {}]
  %s2 = inlined_call_operand.hbm [shape: bf16[64,128], index: 2, kind: input, shape index: {}]
  %s3 = inlined_call_operand.<no memory space> [shape: f32[1], index: 3, kind: input, shape index: {}]
  %s4 = inlined_call_operand.hbm [shape: f32[2,4,64,128], index: 4, kind: output, shape index: {}]
  %s5 = sld [smem:[#allocation0]]
  $region61: #{tpu_custom_call.1} parent=0
    _
  %s7 = ssub.s32 1, %s5
  %s8 = scalar_select 0, %s7, %s5
  %9 = sst [smem:[#allocation2]] %s3
  $region1: #{tpu_custom_call.1} parent=0
    #allocation3 [shape = 'u8[131072]{0}', space=vmem, size = 0x20000, scoped, tag = 'input window, operand 0']
    #allocation4 [shape = 's32[2]{0}', space=sflag, size = 0x8, scoped, tag = 'scoped memory for tpu_custom_call.1']
    #allocation5 [shape = 's32[2]{0}', space=sflag, size = 0x8, scoped, tag = 'scoped memory for tpu_custom_call.1']
    #allocation6 [shape = 'u8[32768]{0}', space=vmem, size = 0x8000, scoped, tag = 'input window, operand 1, single buffered']
    #allocation7 [shape = 's32[1]{0}', space=sflag, size = 0x4, scoped, tag = 'scoped memory for tpu_custom_call.1']
    #allocation8 [shape = 'u8[16384]{0}', space=vmem, size = 0x4000, scoped, tag = 'input window, operand 2, single buffered']
    #allocation9 [shape = 'u8[262144]{0}', space=vmem, size = 0x40000, scoped, tag = 'output window, operand 0']
    %10 = vsyncpa [#allocation4], 0
    %s11 = scalar_lea.sflag [#allocation4], 1
    %12 = vsyncpa %s11, 0
    %13 = vsyncpa [#allocation7], 0
    %14 = vsyncpa [#allocation5], 0
    %s15 = scalar_lea.sflag [#allocation5], 1
    %16 = vsyncpa %s15, 0
    loop: start=0, step=1, limit=4
    $region2: #{tpu_custom_call.1} parent=1 // loop_pre_header
      _
    $region3: #{tpu_custom_call.1} parent=1 // loop_header
      %s18 = sphi 0, %s22
      %p19 = scmp.ge.s32.totalorder %s18, 4
      %s28 = sphi 0, %s30
      %s31 = sphi 0, %s28
      %s32 = sphi 0, %s31
      %s48 = sphi 0, %s32
      %s52 = sphi 0, %s52
      %s54 = sphi 0, %s52
      %s55 = sphi 0, %s54
      %s69 = sphi 0, %s55
      %s73 = sphi 0, %s73
      %s75 = sphi 0, %s73
      %s76 = sphi 0, %s75
      %s90 = sphi 0, %s76
      %s94 = sphi 0, %s94
      %s96 = sphi 0, %s94
      %s97 = sphi 0, %s96
      %s111 = sphi 0, %s97
      %s117 = sphi 0, %s119
      %s120 = sphi 0, %s117
      %s121 = sphi 0, %s120
      %s137 = sphi 0, %s121
    $region4: #{tpu_custom_call.1} parent=1 // loop_header_branch
      %21 = sbr.rel (%p19) target = $region8
    $region5: #{tpu_custom_call.1} parent=1 // loop_body
      %s23 = ssub.s32 %s18, 1
      %s24 = ssub.s32 %s18, 2
      %s25 = sadd.s32 %s18, 1
      %s26 = ssub.s32 %s18, %s25
      %p27 = scmp.eq.s32.totalorder %s26, 0
      %s29 = sadd.s32 %s28, 1
      %s30 = scalar_select %p27, %s28, %s29
      %p33 = pneg %p27
      %p34 = scmp.eq.s32.totalorder %s18, 1
      %p35 = por %p33, %p34
      %p36 = scmp.ne.s32.totalorder %s28, %s31
      %p37 = scmp.eq.s32.totalorder %s18, 0
      %p38 = por %p36, %p37
      %p39 = scmp.ne.s32.totalorder %s28, %s31
      %p40 = scmp.eq.s32.totalorder %s23, 1
      %p41 = por %p39, %p40
      %p42 = scmp.ne.s32.totalorder %s31, %s32
      %p43 = scmp.eq.s32.totalorder %s23, 0
      %p44 = por %p42, %p43
      %p45 = scmp.ne.s32.totalorder %s31, %s32
      %p46 = scmp.eq.s32.totalorder %s24, 1
      %p47 = por %p45, %p46
      %p49 = scmp.ne.s32.totalorder %s32, %s48
      %p50 = scmp.eq.s32.totalorder %s24, 0
      %p51 = por %p49, %p50
      %s53 = sadd.s32 %s52, 1
      %p56 = scmp.eq.s32.totalorder %s18, 1
      %p57 = scmp.ne.s32.totalorder %s52, %s54
      %p58 = scmp.eq.s32.totalorder %s18, 0
      %p59 = por %p57, %p58
      %p60 = scmp.ne.s32.totalorder %s52, %s54
      %p61 = scmp.eq.s32.totalorder %s23, 1
      %p62 = por %p60, %p61
      %p63 = scmp.ne.s32.totalorder %s54, %s55
      %p64 = scmp.eq.s32.totalorder %s23, 0
      %p65 = por %p63, %p64
      %p66 = scmp.ne.s32.totalorder %s54, %s55
      %p67 = scmp.eq.s32.totalorder %s24, 1
      %p68 = por %p66, %p67
      %p70 = scmp.ne.s32.totalorder %s55, %s69
      %p71 = scmp.eq.s32.totalorder %s24, 0
      %p72 = por %p70, %p71
      %s74 = sadd.s32 %s73, 1
      %p77 = scmp.eq.s32.totalorder %s18, 1
      %p78 = scmp.ne.s32.totalorder %s73, %s75
      %p79 = scmp.eq.s32.totalorder %s18, 0
      %p80 = por %p78, %p79
      %p81 = scmp.ne.s32.totalorder %s73, %s75
      %p82 = scmp.eq.s32.totalorder %s23, 1
      %p83 = por %p81, %p82
      %p84 = scmp.ne.s32.totalorder %s75, %s76
      %p85 = scmp.eq.s32.totalorder %s23, 0
      %p86 = por %p84, %p85
      %p87 = scmp.ne.s32.totalorder %s75, %s76
      %p88 = scmp.eq.s32.totalorder %s24, 1
      %p89 = por %p87, %p88
      %p91 = scmp.ne.s32.totalorder %s76, %s90
      %p92 = scmp.eq.s32.totalorder %s24, 0
      %p93 = por %p91, %p92
      %s95 = sadd.s32 %s94, 1
      %p98 = scmp.eq.s32.totalorder %s18, 1
      %p99 = scmp.ne.s32.totalorder %s94, %s96
      %p100 = scmp.eq.s32.totalorder %s18, 0
      %p101 = por %p99, %p100
      %p102 = scmp.ne.s32.totalorder %s94, %s96
      %p103 = scmp.eq.s32.totalorder %s23, 1
      %p104 = por %p102, %p103
      %p105 = scmp.ne.s32.totalorder %s96, %s97
      %p106 = scmp.eq.s32.totalorder %s23, 0
      %p107 = por %p105, %p106
      %p108 = scmp.ne.s32.totalorder %s96, %s97
      %p109 = scmp.eq.s32.totalorder %s24, 1
      %p110 = por %p108, %p109
      %p112 = scmp.ne.s32.totalorder %s97, %s111
      %p113 = scmp.eq.s32.totalorder %s24, 0
      %p114 = por %p112, %p113
      %s115 = ssub.s32 %s18, %s25
      %p116 = scmp.eq.s32.totalorder %s115, 0
      %s118 = sadd.s32 %s117, 1
      %s119 = scalar_select %p116, %s117, %s118
      %p122 = pneg %p116
      %p123 = scmp.eq.s32.totalorder %s18, 1
      %p124 = por %p122, %p123
      %p125 = scmp.ne.s32.totalorder %s117, %s120
      %p126 = scmp.eq.s32.totalorder %s18, 0
      %p127 = por %p125, %p126
      %p128 = scmp.ne.s32.totalorder %s117, %s120
      %p129 = scmp.eq.s32.totalorder %s23, 1
      %p130 = por %p128, %p129
      %p131 = scmp.ne.s32.totalorder %s120, %s121
      %p132 = scmp.eq.s32.totalorder %s23, 0
      %p133 = por %p131, %p132
      %p134 = scmp.ne.s32.totalorder %s120, %s121
      %p135 = scmp.eq.s32.totalorder %s24, 1
      %p136 = por %p134, %p135
      %p138 = scmp.ne.s32.totalorder %s121, %s137
      %p139 = scmp.eq.s32.totalorder %s24, 0
      %p140 = por %p138, %p139
      %p141 = scmp.le.s32.totalorder 1, %s18
      %p142 = scmp.lt.s32.totalorder %s18, 3
      %p143 = pnand %p141, %p142
      %p144 = pneg %p143
      // Predicated region
      $region9: #{tpu_custom_call.1} parent=5 // pred_check
        _
      $region10: #{tpu_custom_call.1} parent=5 // pred_check_branch
        %146 = sbr.rel (%p143) target = $region12
      $region11: #{tpu_custom_call.1} parent=5 // pred_region
        %s147 = ssub.s32 %s18, 1
        // Predicated region
        $region13: #{tpu_custom_call.1} parent=11 // pred_check
          %p148 = pneg %p65
        $region14: #{tpu_custom_call.1} parent=11 // pred_check_branch
          %150 = sbr.rel (%p148) target = $region16
        $region15: #{tpu_custom_call.1} parent=11 // pred_region
          %s152 = ssub.s32 1024, 1024
          %153 = vsyncadd [#allocation7], %s152
          %s154 = sshll.u32 [#allocation6], 4
          %s155 = int_to_ptr.vmem [resolvable:$true] %s154
          %160 = dma.hbm_to_vmem [thread:$0]  %s1, 1024, %s155, [#allocation7], 64, 64, 4
        $region16: #{tpu_custom_call.1} parent=11 // pred_fallthru
          _
        // Predicated region
        $region17: #{tpu_custom_call.1} parent=11 // pred_check
          %p161 = pneg %p86
        $region18: #{tpu_custom_call.1} parent=11 // pred_check_branch
          %163 = sbr.rel (%p161) target = $region20
        $region19: #{tpu_custom_call.1} parent=11 // pred_region
          %s165 = ssub.s32 512, 512
          %166 = vsyncadd [#allocation7], %s165
          %s167 = sshll.u32 [#allocation8], 4
          %s168 = int_to_ptr.vmem [resolvable:$true] %s167
          %173 = dma.hbm_to_vmem [thread:$0]  %s2, 512, %s168, [#allocation7], 64, 64, 4
        $region20: #{tpu_custom_call.1} parent=11 // pred_fallthru
          _
        // Predicated region
        $region21: #{tpu_custom_call.1} parent=11 // pred_check
          %p174 = pneg %p107
        $region22: #{tpu_custom_call.1} parent=11 // pred_check_branch
          %176 = sbr.rel (%p174) target = $region24
        $region23: #{tpu_custom_call.1} parent=11 // pred_region
          _
        $region24: #{tpu_custom_call.1} parent=11 // pred_fallthru
          _
      $region12: #{tpu_custom_call.1} parent=5 // pred_fallthru
        _
      %p177 = scmp.lt.s32.totalorder %s18, 2
      // Predicated region
      $region25: #{tpu_custom_call.1} parent=5 // pred_check
        %p178 = pneg %p177
      $region26: #{tpu_custom_call.1} parent=5 // pred_check_branch
        %180 = sbr.rel (%p178) target = $region28
      $region27: #{tpu_custom_call.1} parent=5 // pred_region
        // Predicated region
        $region29: #{tpu_custom_call.1} parent=27 // pred_check
          %p181 = pneg %p38
        $region30: #{tpu_custom_call.1} parent=27 // pred_check_branch
          %183 = sbr.rel (%p181) target = $region32
        $region31: #{tpu_custom_call.1} parent=27 // pred_region
          %s184 = sand.u32 %s28, 1
          %s185 = scalar_lea.sflag [#allocation4], %s184
          %s186 = sand.u32 %s28, 1
          %s187 = smul.addr %s186, 128
          %s188 = scalar_lea.vmem [#allocation3], %s187
          %s190 = ssub.s32 2048, 2048
          %191 = vsyncadd %s185, %s190
          %s192 = smul.addr %s18, 32
          %s193 = smul.addr %s192, 64
          %s194 = scalar_lea.hbm %s0, %s193
          %s195 = sshll.u32 %s188, 4
          %s196 = int_to_ptr.vmem [resolvable:$true] %s195
          %201 = dma.hbm_to_vmem [thread:$0]  %s194, 2048, %s196, %s185, 64, 64, 4
        $region32: #{tpu_custom_call.1} parent=27 // pred_fallthru
          _
      $region28: #{tpu_custom_call.1} parent=5 // pred_fallthru
        _
      %p202 = scmp.le.s32.totalorder 1, %s18
      %p203 = scmp.lt.s32.totalorder %s18, 3
      %p204 = pnand %p202, %p203
      %p205 = pneg %p204
      // Predicated region
      $region33: #{tpu_custom_call.1} parent=5 // pred_check
        _
      $region34: #{tpu_custom_call.1} parent=5 // pred_check_branch
        %207 = sbr.rel (%p204) target = $region36
      $region35: #{tpu_custom_call.1} parent=5 // pred_region
        %s208 = ssub.s32 %s18, 1
        %s209 = sand.u32 %s31, 1
        %s210 = scalar_lea.sflag [#allocation4], %s209
        %s211 = sand.u32 %s31, 1
        %s212 = smul.addr %s211, 128
        %s213 = scalar_lea.vmem [#allocation3], %s212
        // Predicated region
        $region37: #{tpu_custom_call.1} parent=35 // pred_check
          %p214 = pneg %p44
        $region38: #{tpu_custom_call.1} parent=35 // pred_check_branch
          %216 = sbr.rel (%p214) target = $region40
        $region39: #{tpu_custom_call.1} parent=35 // pred_region
          %217 = dma.done %s210, 2048
        $region40: #{tpu_custom_call.1} parent=35 // pred_fallthru
          _
        // Predicated region
        $region41: #{tpu_custom_call.1} parent=35 // pred_check
          %p218 = pneg %p65
        $region42: #{tpu_custom_call.1} parent=35 // pred_check_branch
          %220 = sbr.rel (%p218) target = $region44
        $region43: #{tpu_custom_call.1} parent=35 // pred_region
          %221 = dma.done [#allocation7], 1024
        $region44: #{tpu_custom_call.1} parent=35 // pred_fallthru
          _
        // Predicated region
        $region45: #{tpu_custom_call.1} parent=35 // pred_check
          %p222 = pneg %p86
        $region46: #{tpu_custom_call.1} parent=35 // pred_check_branch
          %224 = sbr.rel (%p222) target = $region48
        $region47: #{tpu_custom_call.1} parent=35 // pred_region
          %225 = dma.done [#allocation7], 512
        $region48: #{tpu_custom_call.1} parent=35 // pred_fallthru
          _
        %s226 = sand.u32 %s31, 1
        %s227 = scalar_lea.sflag [#allocation4], %s226
        %s228 = sand.u32 %s31, 1
        %s229 = smul.addr %s228, 128
        %s230 = scalar_lea.vmem [#allocation3], %s229
        %p231 = pneg %p44
        %p232 = pneg %p41
        %p233 = pneg %p65
        %p234 = pneg %p62
        %p235 = pneg %p86
        %p236 = pneg %p83
        %p237 = pneg %p107
        %p238 = pneg %p104
        %p239 = pneg %p133
        %p240 = pneg %p130
        %s241 = sand.u32 %s120, 1
        %s242 = scalar_lea.sflag [#allocation5], %s241
        %s243 = sand.u32 %s120, 1
        %s244 = smul.addr %s243, 256
        %s245 = scalar_lea.vmem [#allocation9], %s244
        %s247 = sld [smem:[#allocation2]]
        %v248 = vld [vmem:[%s213] sm:$0xf]
        %v249 = vld [vmem:[%s213 + $0x4] sm:$0xf]
        %v250 = vld [vmem:[%s213 + $0x8] sm:$0xf]
        %v251 = vld [vmem:[%s213 + $0xc] sm:$0xf]
        %v252 = vld [vmem:[%s213 + $0x10] sm:$0xf]
        %v253 = vld [vmem:[%s213 + $0x14] sm:$0xf]
        %v254 = vld [vmem:[%s213 + $0x18] sm:$0xf]
        %v255 = vld [vmem:[%s213 + $0x1c] sm:$0xf]
        %v256 = vld [vmem:[%s213 + $0x20] sm:$0xf]
        %v257 = vld [vmem:[%s213 + $0x24] sm:$0xf]
        %v258 = vld [vmem:[%s213 + $0x28] sm:$0xf]
        %v259 = vld [vmem:[%s213 + $0x2c] sm:$0xf]
        %v260 = vld [vmem:[%s213 + $0x30] sm:$0xf]
        %v261 = vld [vmem:[%s213 + $0x34] sm:$0xf]
        %v262 = vld [vmem:[%s213 + $0x38] sm:$0xf]
        %v263 = vld [vmem:[%s213 + $0x3c] sm:$0xf]
        %v264 = vld [vmem:[%s213 + $0x40] sm:$0xf]
        %v265 = vld [vmem:[%s213 + $0x44] sm:$0xf]
        %v266 = vld [vmem:[%s213 + $0x48] sm:$0xf]
        %v267 = vld [vmem:[%s213 + $0x4c] sm:$0xf]
        %v268 = vld [vmem:[%s213 + $0x50] sm:$0xf]
        %v269 = vld [vmem:[%s213 + $0x54] sm:$0xf]
        %v270 = vld [vmem:[%s213 + $0x58] sm:$0xf]
        %v271 = vld [vmem:[%s213 + $0x5c] sm:$0xf]
        %v272 = vld [vmem:[%s213 + $0x60] sm:$0xf]
        %v273 = vld [vmem:[%s213 + $0x64] sm:$0xf]
        %v274 = vld [vmem:[%s213 + $0x68] sm:$0xf]
        %v275 = vld [vmem:[%s213 + $0x6c] sm:$0xf]
        %v276 = vld [vmem:[%s213 + $0x70] sm:$0xf]
        %v277 = vld [vmem:[%s213 + $0x74] sm:$0xf]
        %v278 = vld [vmem:[%s213 + $0x78] sm:$0xf]
        %v279 = vld [vmem:[%s213 + $0x7c] sm:$0xf]
        %v280 = vld [vmem:[#allocation6] sm:$0xf]
        %v281 = vld [vmem:[#allocation6 + $0x4] sm:$0xf]
        %v282 = vld [vmem:[#allocation6 + $0x8] sm:$0xf]
        %v283 = vld [vmem:[#allocation6 + $0xc] sm:$0xf]
        %v284 = vld [vmem:[#allocation6 + $0x10] sm:$0xf]
        %v285 = vld [vmem:[#allocation6 + $0x14] sm:$0xf]
        %v286 = vld [vmem:[#allocation6 + $0x18] sm:$0xf]
        %v287 = vld [vmem:[#allocation6 + $0x1c] sm:$0xf]
        %v288 = vld [vmem:[#allocation6 + $0x20] sm:$0xf]
        %v289 = vld [vmem:[#allocation6 + $0x24] sm:$0xf]
        %v290 = vld [vmem:[#allocation6 + $0x28] sm:$0xf]
        %v291 = vld [vmem:[#allocation6 + $0x2c] sm:$0xf]
        %v292 = vld [vmem:[#allocation6 + $0x30] sm:$0xf]
        %v293 = vld [vmem:[#allocation6 + $0x34] sm:$0xf]
        %v294 = vld [vmem:[#allocation6 + $0x38] sm:$0xf]
        %v295 = vld [vmem:[#allocation6 + $0x3c] sm:$0xf]
        %v328 = vunpack.c.l.b16 %v248
        %v329 = vunpack.c.l.b16 %v249
        %v330 = vunpack.c.l.b16 %v250
        %v331 = vunpack.c.l.b16 %v251
        %v332 = vunpack.c.l.b16 %v252
        %v333 = vunpack.c.l.b16 %v253
        %v334 = vunpack.c.l.b16 %v254
        %v335 = vunpack.c.l.b16 %v255
        %v336 = vunpack.c.l.b16 %v256
        %v337 = vunpack.c.l.b16 %v257
        %v338 = vunpack.c.l.b16 %v258
        %v339 = vunpack.c.l.b16 %v259
        %v340 = vunpack.c.l.b16 %v260
        %v341 = vunpack.c.l.b16 %v261
        %v342 = vunpack.c.l.b16 %v262
        %v343 = vunpack.c.l.b16 %v263
        %v344 = vunpack.c.l.b16 %v264
        %v345 = vunpack.c.l.b16 %v265
        %v346 = vunpack.c.l.b16 %v266
        %v347 = vunpack.c.l.b16 %v267
        %v348 = vunpack.c.l.b16 %v268
        %v349 = vunpack.c.l.b16 %v269
        %v350 = vunpack.c.l.b16 %v270
        %v351 = vunpack.c.l.b16 %v271
        %v352 = vunpack.c.l.b16 %v272
        %v353 = vunpack.c.l.b16 %v273
        %v354 = vunpack.c.l.b16 %v274
        %v355 = vunpack.c.l.b16 %v275
        %v356 = vunpack.c.l.b16 %v276
        %v357 = vunpack.c.l.b16 %v277
        %v358 = vunpack.c.l.b16 %v278
        %v359 = vunpack.c.l.b16 %v279
        %v360 = vpack.c.b16 %v329, %v328
        %v361 = vpack.c.b16 %v331, %v330
        %v362 = vpack.c.b16 %v333, %v332
        %v363 = vpack.c.b16 %v335, %v334
        %v364 = vpack.c.b16 %v337, %v336
        %v365 = vpack.c.b16 %v339, %v338
        %v366 = vpack.c.b16 %v341, %v340
        %v367 = vpack.c.b16 %v343, %v342
        %v368 = vpack.c.b16 %v345, %v344
        %v369 = vpack.c.b16 %v347, %v346
        %v370 = vpack.c.b16 %v349, %v348
        %v371 = vpack.c.b16 %v351, %v350
        %v372 = vpack.c.b16 %v353, %v352
        %v373 = vpack.c.b16 %v355, %v354
        %v374 = vpack.c.b16 %v357, %v356
        %v375 = vpack.c.b16 %v359, %v358
        %v408 = vunpack.c.l.b16 %v280
        %v409 = vunpack.c.l.b16 %v281
        %v410 = vunpack.c.l.b16 %v282
        %v411 = vunpack.c.l.b16 %v283
        %v412 = vunpack.c.l.b16 %v284
        %v413 = vunpack.c.l.b16 %v285
        %v414 = vunpack.c.l.b16 %v286
        %v415 = vunpack.c.l.b16 %v287
        %v416 = vunpack.c.l.b16 %v288
        %v417 = vunpack.c.l.b16 %v289
        %v418 = vunpack.c.l.b16 %v290
        %v419 = vunpack.c.l.b16 %v291
        %v420 = vunpack.c.l.b16 %v292
        %v421 = vunpack.c.l.b16 %v293
        %v422 = vunpack.c.l.b16 %v294
        %v423 = vunpack.c.l.b16 %v295
        %v424 = vpack.c.b16 %v409, %v408
        %v425 = vpack.c.b16 %v411, %v410
        %v426 = vpack.c.b16 %v413, %v412
        %v427 = vpack.c.b16 %v415, %v414
        %v428 = vpack.c.b16 %v417, %v416
        %v429 = vpack.c.b16 %v419, %v418
        %v430 = vpack.c.b16 %v421, %v420
        %v431 = vpack.c.b16 %v423, %v422
        %440 = vmatprep.subr.bf16.mxu0 0
        %441 = vmatpush1.bf16.msra.mxu0 %v424
        %442 = vmatprep.subr.bf16.mxu0 0
        %443 = vmatpush1.bf16.msra.mxu0 %v425
        %444 = vmatprep.subr.bf16.mxu0 0
        %445 = vmatpush1.bf16.msra.mxu0 %v426
        %446 = vmatprep.subr.bf16.mxu0 0
        %447 = vmatpush1.bf16.msra.mxu0 %v427
        %448 = vmatprep.subr.bf16.mxu0 0
        %449 = vmatpush1.bf16.msra.mxu0 %v428
        %450 = vmatprep.subr.bf16.mxu0 0
        %451 = vmatpush1.bf16.msra.mxu0 %v429
        %452 = vmatprep.subr.bf16.mxu0 0
        %453 = vmatpush1.bf16.msra.mxu0 %v430
        %454 = vmatprep.subr.bf16.mxu0 0
        %455 = vmatpush1.bf16.msra.mxu0 %v431
        %456 = vmatprep.subr.bf16.mxu0 0
        %457 = vmatpush1.bf16.msra.mxu0 0
        %458 = vmatprep.subr.bf16.mxu0 0
        %459 = vmatpush1.bf16.msra.mxu0 0
        %460 = vmatprep.subr.bf16.mxu0 0
        %461 = vmatpush1.bf16.msra.mxu0 0
        %462 = vmatprep.subr.bf16.mxu0 0
        %463 = vmatpush1.bf16.msra.mxu0 0
        %464 = vmatprep.subr.bf16.mxu0 0
        %465 = vmatpush1.bf16.msra.mxu0 0
        %466 = vmatprep.subr.bf16.mxu0 0
        %467 = vmatpush1.bf16.msra.mxu0 0
        %468 = vmatprep.subr.bf16.mxu0 0
        %469 = vmatpush1.bf16.msra.mxu0 0
        %470 = vmatprep.subr.bf16.mxu0 0
        %471 = vmatpush1.bf16.msra.mxu0 0
        %472 = vmatprep.mubr.bf16.mxu0 0
        %473 = vmatmul.mubr.bf16.gmra.mrb[0].mxu0 %v360
        %v474 = vpop.f32.mrb[0].mxu0
        %v475 = vadd.f32 0.0, %v474
        %v476 = vpop.f32.mrb[0].mxu0
        %v477 = vpop.f32.mrb[0].mxu0
        %v478 = vadd.f32 0.0, %v477
        %v479 = vpop.f32.mrb[0].mxu0
        %480 = vmatprep.mubr.bf16.mxu0 0
        %481 = vmatmul.mubr.bf16.gmra.mrb[0].mxu0 %v361
        %v482 = vpop.f32.mrb[0].mxu0
        %v483 = vadd.f32 0.0, %v482
        %v484 = vpop.f32.mrb[0].mxu0
        %v485 = vpop.f32.mrb[0].mxu0
        %v486 = vadd.f32 0.0, %v485
        %v487 = vpop.f32.mrb[0].mxu0
        %488 = vmatprep.mubr.bf16.mxu0 0
        %489 = vmatmul.mubr.bf16.gmra.mrb[0].mxu0 %v362
        %v490 = vpop.f32.mrb[0].mxu0
        %v491 = vadd.f32 0.0, %v490
        %v492 = vpop.f32.mrb[0].mxu0
        %v493 = vpop.f32.mrb[0].mxu0
        %v494 = vadd.f32 0.0, %v493
        %v495 = vpop.f32.mrb[0].mxu0
        %496 = vmatprep.mubr.bf16.mxu0 0
        %497 = vmatmul.mubr.bf16.gmra.mrb[0].mxu0 %v363
        %v498 = vpop.f32.mrb[0].mxu0
        %v499 = vadd.f32 0.0, %v498
        %v500 = vpop.f32.mrb[0].mxu0
        %v501 = vpop.f32.mrb[0].mxu0
        %v502 = vadd.f32 0.0, %v501
        %v503 = vpop.f32.mrb[0].mxu0
        %504 = vmatprep.mubr.bf16.mxu0 0
        %505 = vmatmul.mubr.bf16.gmra.mrb[0].mxu0 %v364
        %v506 = vpop.f32.mrb[0].mxu0
        %v507 = vadd.f32 0.0, %v506
        %v508 = vpop.f32.mrb[0].mxu0
        %v509 = vpop.f32.mrb[0].mxu0
        %v510 = vadd.f32 0.0, %v509
        %v511 = vpop.f32.mrb[0].mxu0
        %512 = vmatprep.mubr.bf16.mxu0 0
        %513 = vmatmul.mubr.bf16.gmra.mrb[0].mxu0 %v365
        %v514 = vpop.f32.mrb[0].mxu0
        %v515 = vadd.f32 0.0, %v514
        %v516 = vpop.f32.mrb[0].mxu0
        %v517 = vpop.f32.mrb[0].mxu0
        %v518 = vadd.f32 0.0, %v517
        %v519 = vpop.f32.mrb[0].mxu0
        %520 = vmatprep.mubr.bf16.mxu0 0
        %521 = vmatmul.mubr.bf16.gmra.mrb[0].mxu0 %v366
        %v522 = vpop.f32.mrb[0].mxu0
        %v523 = vadd.f32 0.0, %v522
        %v524 = vpop.f32.mrb[0].mxu0
        %v525 = vpop.f32.mrb[0].mxu0
        %v526 = vadd.f32 0.0, %v525
        %v527 = vpop.f32.mrb[0].mxu0
        %528 = vmatprep.mubr.bf16.mxu0 0
        %529 = vmatmul.mubr.bf16.gmra.mrb[0].mxu0 %v367
        %v530 = vpop.f32.mrb[0].mxu0
        %v531 = vadd.f32 0.0, %v530
        %v532 = vpop.f32.mrb[0].mxu0
        %v533 = vpop.f32.mrb[0].mxu0
        %v534 = vadd.f32 0.0, %v533
        %v535 = vpop.f32.mrb[0].mxu0
        %536 = vmatprep.mubr.bf16.mxu0 0
        %537 = vmatmul.mubr.bf16.gmra.mrb[0].mxu0 %v368
        %v538 = vpop.f32.mrb[0].mxu0
        %v539 = vadd.f32 0.0, %v538
        %v540 = vpop.f32.mrb[0].mxu0
        %v541 = vpop.f32.mrb[0].mxu0
        %v542 = vadd.f32 0.0, %v541
        %v543 = vpop.f32.mrb[0].mxu0
        %544 = vmatprep.mubr.bf16.mxu0 0
        %545 = vmatmul.mubr.bf16.gmra.mrb[0].mxu0 %v369
        %v546 = vpop.f32.mrb[0].mxu0
        %v547 = vadd.f32 0.0, %v546
        %v548 = vpop.f32.mrb[0].mxu0
        %v549 = vpop.f32.mrb[0].mxu0
        %v550 = vadd.f32 0.0, %v549
        %v551 = vpop.f32.mrb[0].mxu0
        %552 = vmatprep.mubr.bf16.mxu0 0
        %553 = vmatmul.mubr.bf16.gmra.mrb[0].mxu0 %v370
        %v554 = vpop.f32.mrb[0].mxu0
        %v555 = vadd.f32 0.0, %v554
        %v556 = vpop.f32.mrb[0].mxu0
        %v557 = vpop.f32.mrb[0].mxu0
        %v558 = vadd.f32 0.0, %v557
        %v559 = vpop.f32.mrb[0].mxu0
        %560 = vmatprep.mubr.bf16.mxu0 0
        %561 = vmatmul.mubr.bf16.gmra.mrb[0].mxu0 %v371
        %v562 = vpop.f32.mrb[0].mxu0
        %v563 = vadd.f32 0.0, %v562
        %v564 = vpop.f32.mrb[0].mxu0
        %v565 = vpop.f32.mrb[0].mxu0
        %v566 = vadd.f32 0.0, %v565
        %v567 = vpop.f32.mrb[0].mxu0
        %568 = vmatprep.mubr.bf16.mxu0 0
        %569 = vmatmul.mubr.bf16.gmra.mrb[0].mxu0 %v372
        %v570 = vpop.f32.mrb[0].mxu0
        %v571 = vadd.f32 0.0, %v570
        %v572 = vpop.f32.mrb[0].mxu0
        %v573 = vpop.f32.mrb[0].mxu0
        %v574 = vadd.f32 0.0, %v573
        %v575 = vpop.f32.mrb[0].mxu0
        %576 = vmatprep.mubr.bf16.mxu0 0
        %577 = vmatmul.mubr.bf16.gmra.mrb[0].mxu0 %v373
        %v578 = vpop.f32.mrb[0].mxu0
        %v579 = vadd.f32 0.0, %v578
        %v580 = vpop.f32.mrb[0].mxu0
        %v581 = vpop.f32.mrb[0].mxu0
        %v582 = vadd.f32 0.0, %v581
        %v583 = vpop.f32.mrb[0].mxu0
        %584 = vmatprep.mubr.bf16.mxu0 0
        %585 = vmatmul.mubr.bf16.gmra.mrb[0].mxu0 %v374
        %v586 = vpop.f32.mrb[0].mxu0
        %v587 = vadd.f32 0.0, %v586
        %v588 = vpop.f32.mrb[0].mxu0
        %v589 = vpop.f32.mrb[0].mxu0
        %v590 = vadd.f32 0.0, %v589
        %v591 = vpop.f32.mrb[0].mxu0
        %592 = vmatprep.mubr.bf16.mxu0 0
        %593 = vmatmul.mubr.bf16.gmra.mrb[0].mxu0 %v375
        %v594 = vpop.f32.mrb[0].mxu0
        %v595 = vadd.f32 0.0, %v594
        %v596 = vpop.f32.mrb[0].mxu0
        %v597 = vpop.f32.mrb[0].mxu0
        %v598 = vadd.f32 0.0, %v597
        %v599 = vpop.f32.mrb[0].mxu0
        %600 = vdwg.mxu0
        %vm601 = vcmask 261248
        %v602 = vsel %vm601, %v475, -inf
        %v603 = vsel %vm601, %v507, -inf
        %v604 = vmax.f32 %v602, %v603
        %v605 = vsel %vm601, %v539, -inf
        %v606 = vmax.f32 %v604, %v605
        %v607 = vsel %vm601, %v571, -inf
        %v608 = vmax.f32 %v606, %v607
        %v609 = vsel %vm601, %v478, -inf
        %v610 = vsel %vm601, %v510, -inf
        %v611 = vmax.f32 %v609, %v610
        %v612 = vsel %vm601, %v542, -inf
        %v613 = vmax.f32 %v611, %v612
        %v614 = vsel %vm601, %v574, -inf
        %v615 = vmax.f32 %v613, %v614
        %v616 = vsel %vm601, %v483, -inf
        %v617 = vsel %vm601, %v515, -inf
        %v618 = vmax.f32 %v616, %v617
        %v619 = vsel %vm601, %v547, -inf
        %v620 = vmax.f32 %v618, %v619
        %v621 = vsel %vm601, %v579, -inf
        %v622 = vmax.f32 %v620, %v621
        %v623 = vsel %vm601, %v486, -inf
        %v624 = vsel %vm601, %v518, -inf
        %v625 = vmax.f32 %v623, %v624
        %v626 = vsel %vm601, %v550, -inf
        %v627 = vmax.f32 %v625, %v626
        %v628 = vsel %vm601, %v582, -inf
        %v629 = vmax.f32 %v627, %v628
        %v630 = vsel %vm601, %v491, -inf
        %v631 = vsel %vm601, %v523, -inf
        %v632 = vmax.f32 %v630, %v631
        %v633 = vsel %vm601, %v555, -inf
        %v634 = vmax.f32 %v632, %v633
        %v635 = vsel %vm601, %v587, -inf
        %v636 = vmax.f32 %v634, %v635
        %v637 = vsel %vm601, %v494, -inf
        %v638 = vsel %vm601, %v526, -inf
        %v639 = vmax.f32 %v637, %v638
        %v640 = vsel %vm601, %v558, -inf
        %v641 = vmax.f32 %v639, %v640
        %v642 = vsel %vm601, %v590, -inf
        %v643 = vmax.f32 %v641, %v642
        %v644 = vsel %vm601, %v499, -inf
        %v645 = vsel %vm601, %v531, -inf
        %v646 = vmax.f32 %v644, %v645
        %v647 = vsel %vm601, %v563, -inf
        %v648 = vmax.f32 %v646, %v647
        %v649 = vsel %vm601, %v595, -inf
        %v650 = vmax.f32 %v648, %v649
        %v651 = vsel %vm601, %v502, -inf
        %v652 = vsel %vm601, %v534, -inf
        %v653 = vmax.f32 %v651, %v652
        %v654 = vsel %vm601, %v566, -inf
        %v655 = vmax.f32 %v653, %v654
        %v656 = vsel %vm601, %v598, -inf
        %v657 = vmax.f32 %v655, %v656
        %vm658 = vcmask 785664
        %v659 = vsel %vm658, %v475, -inf
        %v660 = vsel %vm658, %v507, -inf
        %v661 = vmax.f32 %v659, %v660
        %v662 = vsel %vm658, %v539, -inf
        %v663 = vmax.f32 %v661, %v662
        %v664 = vsel %vm658, %v571, -inf
        %v665 = vmax.f32 %v663, %v664
        %v666 = vsel %vm658, %v478, -inf
        %v667 = vsel %vm658, %v510, -inf
        %v668 = vmax.f32 %v666, %v667
        %v669 = vsel %vm658, %v542, -inf
        %v670 = vmax.f32 %v668, %v669
        %v671 = vsel %vm658, %v574, -inf
        %v672 = vmax.f32 %v670, %v671
        %v673 = vsel %vm658, %v483, -inf
        %v674 = vsel %vm658, %v515, -inf
        %v675 = vmax.f32 %v673, %v674
        %v676 = vsel %vm658, %v547, -inf
        %v677 = vmax.f32 %v675, %v676
        %v678 = vsel %vm658, %v579, -inf
        %v679 = vmax.f32 %v677, %v678
        %v680 = vsel %vm658, %v486, -inf
        %v681 = vsel %vm658, %v518, -inf
        %v682 = vmax.f32 %v680, %v681
        %v683 = vsel %vm658, %v550, -inf
        %v684 = vmax.f32 %v682, %v683
        %v685 = vsel %vm658, %v582, -inf
        %v686 = vmax.f32 %v684, %v685
        %v687 = vsel %vm658, %v491, -inf
        %v688 = vsel %vm658, %v523, -inf
        %v689 = vmax.f32 %v687, %v688
        %v690 = vsel %vm658, %v555, -inf
        %v691 = vmax.f32 %v689, %v690
        %v692 = vsel %vm658, %v587, -inf
        %v693 = vmax.f32 %v691, %v692
        %v694 = vsel %vm658, %v494, -inf
        %v695 = vsel %vm658, %v526, -inf
        %v696 = vmax.f32 %v694, %v695
        %v697 = vsel %vm658, %v558, -inf
        %v698 = vmax.f32 %v696, %v697
        %v699 = vsel %vm658, %v590, -inf
        %v700 = vmax.f32 %v698, %v699
        %v701 = vsel %vm658, %v499, -inf
        %v702 = vsel %vm658, %v531, -inf
        %v703 = vmax.f32 %v701, %v702
        %v704 = vsel %vm658, %v563, -inf
        %v705 = vmax.f32 %v703, %v704
        %v706 = vsel %vm658, %v595, -inf
        %v707 = vmax.f32 %v705, %v706
        %v708 = vsel %vm658, %v502, -inf
        %v709 = vsel %vm658, %v534, -inf
        %v710 = vmax.f32 %v708, %v709
        %v711 = vsel %vm658, %v566, -inf
        %v712 = vmax.f32 %v710, %v711
        %v713 = vsel %vm658, %v598, -inf
        %v714 = vmax.f32 %v712, %v713
        %v715 = vpack.c.bf16 %v478, %v475
        %v716 = vpack.c.bf16 %v486, %v483
        %v717 = vpack.c.bf16 %v494, %v491
        %v718 = vpack.c.bf16 %v502, %v499
        %v719 = vpack.c.bf16 %v510, %v507
        %v720 = vpack.c.bf16 %v518, %v515
        %v721 = vpack.c.bf16 %v526, %v523
        %v722 = vpack.c.bf16 %v534, %v531
        %v723 = vpack.c.bf16 %v542, %v539
        %v724 = vpack.c.bf16 %v550, %v547
        %v725 = vpack.c.bf16 %v558, %v555
        %v726 = vpack.c.bf16 %v566, %v563
        %v727 = vpack.c.bf16 %v574, %v571
        %v728 = vpack.c.bf16 %v582, %v579
        %v729 = vpack.c.bf16 %v590, %v587
        %v730 = vpack.c.bf16 %v598, %v595
        %v731 = vpack.c.bf16 %v615, %v608
        %v732 = vpack.c.bf16 %v629, %v622
        %v733 = vpack.c.bf16 %v643, %v636
        %v734 = vpack.c.bf16 %v657, %v650
        %739 = vrot.lane.b32.xlu0 %v731, 112
        %v740 = vpop.permute.xlu0 %739
        %741 = vrot.lane.b32.xlu0 %v732, 112
        %v742 = vpop.permute.xlu0 %741
        %743 = vrot.lane.b32.xlu0 %v733, 112
        %v744 = vpop.permute.xlu0 %743
        %745 = vrot.lane.b32.xlu0 %v734, 112
        %v746 = vpop.permute.xlu0 %745
        %vm747 = vcmask 130048
        %v749 = vsel %vm747, %v715, 0
        %v752 = vsel %vm747, %v716, 0
        %v755 = vsel %vm747, %v717, 0
        %v758 = vsel %vm747, %v718, 0
        %v761 = vsel %vm747, %v719, 0
        %v764 = vsel %vm747, %v720, 0
        %v767 = vsel %vm747, %v721, 0
        %v770 = vsel %vm747, %v722, 0
        %v773 = vsel %vm747, %v723, 0
        %v776 = vsel %vm747, %v724, 0
        %v779 = vsel %vm747, %v725, 0
        %v782 = vsel %vm747, %v726, 0
        %v785 = vsel %vm747, %v727, 0
        %v788 = vsel %vm747, %v728, 0
        %v791 = vsel %vm747, %v729, 0
        %v794 = vsel %vm747, %v730, 0
        %v797 = vsel %vm747, %v740, 0
        %v800 = vsel %vm747, %v742, 0
        %v803 = vsel %vm747, %v744, 0
        %v806 = vsel %vm747, %v746, 0
        %808 = vmatprep.subr.bf16.mxu0 0
        %809 = vmatpush1.bf16.xpose.msra.mxu0 %v797
        %810 = vmatprep.subr.bf16.mxu0 0
        %811 = vmatpush1.bf16.xpose.msra.mxu0 %v800
        %812 = vmatprep.subr.bf16.mxu0 0
        %813 = vmatpush1.bf16.xpose.msra.mxu0 %v803
        %814 = vmatprep.subr.bf16.mxu0 0
        %815 = vmatpush1.bf16.xpose.msra.mxu0 %v806
        %816 = vmatprep.subr.bf16.mxu0 0
        %817 = vmatpush1.bf16.xpose.msra.mxu0 0
        %818 = vmatprep.subr.bf16.mxu0 0
        %819 = vmatpush1.bf16.xpose.msra.mxu0 0
        %820 = vmatprep.subr.bf16.mxu0 0
        %821 = vmatpush1.bf16.xpose.msra.mxu0 0
        %822 = vmatprep.subr.bf16.mxu0 0
        %823 = vmatpush1.bf16.xpose.msra.mxu0 0
        %824 = vmatprep.subr.bf16.mxu0 0
        %825 = vmatpush1.bf16.xpose.msra.mxu0 0
        %826 = vmatprep.subr.bf16.mxu0 0
        %827 = vmatpush1.bf16.xpose.msra.mxu0 0
        %828 = vmatprep.subr.bf16.mxu0 0
        %829 = vmatpush1.bf16.xpose.msra.mxu0 0
        %830 = vmatprep.subr.bf16.mxu0 0
        %831 = vmatpush1.bf16.xpose.msra.mxu0 0
        %832 = vmatprep.subr.bf16.mxu0 0
        %833 = vmatpush1.bf16.xpose.msra.mxu0 0
        %834 = vmatprep.subr.bf16.mxu0 0
        %835 = vmatpush1.bf16.xpose.msra.mxu0 0
        %836 = vmatprep.subr.bf16.mxu0 0
        %837 = vmatpush1.bf16.xpose.msra.mxu0 0
        %838 = vmatprep.subr.bf16.mxu0 0
        %839 = vmatpush1.bf16.xpose.msra.mxu0 0
        %840 = vmatprep.mubr.bf16.mxu0 0
        %841 = vmatmul.mubr.bf16.gmra.mrb[0].mxu0 %v749
        %v842 = vpop.f32.mrb[0].mxu0
        %v843 = vadd.f32 0.0, %v842
        %v844 = vpop.f32.mrb[0].mxu0
        %v845 = vpop.f32.mrb[0].mxu0
        %v846 = vadd.f32 0.0, %v845
        %v847 = vpop.f32.mrb[0].mxu0
        %848 = vmatprep.mubr.bf16.mxu0 0
        %849 = vmatmul.mubr.bf16.gmra.mrb[0].mxu0 %v752
        %v850 = vpop.f32.mrb[0].mxu0
        %v851 = vadd.f32 0.0, %v850
        %v852 = vpop.f32.mrb[0].mxu0
        %v853 = vpop.f32.mrb[0].mxu0
        %v854 = vadd.f32 0.0, %v853
        %v855 = vpop.f32.mrb[0].mxu0
        %856 = vmatprep.mubr.bf16.mxu0 0
        %857 = vmatmul.mubr.bf16.gmra.mrb[0].mxu0 %v755
        %v858 = vpop.f32.mrb[0].mxu0
        %v859 = vadd.f32 0.0, %v858
        %v860 = vpop.f32.mrb[0].mxu0
        %v861 = vpop.f32.mrb[0].mxu0
        %v862 = vadd.f32 0.0, %v861
        %v863 = vpop.f32.mrb[0].mxu0
        %864 = vmatprep.mubr.bf16.mxu0 0
        %865 = vmatmul.mubr.bf16.gmra.mrb[0].mxu0 %v758
        %v866 = vpop.f32.mrb[0].mxu0
        %v867 = vadd.f32 0.0, %v866
        %v868 = vpop.f32.mrb[0].mxu0
        %v869 = vpop.f32.mrb[0].mxu0
        %v870 = vadd.f32 0.0, %v869
        %v871 = vpop.f32.mrb[0].mxu0
        %872 = vmatprep.mubr.bf16.mxu0 0
        %873 = vmatmul.mubr.bf16.gmra.mrb[0].mxu0 %v761
        %v874 = vpop.f32.mrb[0].mxu0
        %v875 = vadd.f32 0.0, %v874
        %v876 = vpop.f32.mrb[0].mxu0
        %v877 = vpop.f32.mrb[0].mxu0
        %v878 = vadd.f32 0.0, %v877
        %v879 = vpop.f32.mrb[0].mxu0
        %880 = vmatprep.mubr.bf16.mxu0 0
        %881 = vmatmul.mubr.bf16.gmra.mrb[0].mxu0 %v764
        %v882 = vpop.f32.mrb[0].mxu0
        %v883 = vadd.f32 0.0, %v882
        %v884 = vpop.f32.mrb[0].mxu0
        %v885 = vpop.f32.mrb[0].mxu0
        %v886 = vadd.f32 0.0, %v885
        %v887 = vpop.f32.mrb[0].mxu0
        %888 = vmatprep.mubr.bf16.mxu0 0
        %889 = vmatmul.mubr.bf16.gmra.mrb[0].mxu0 %v767
        %v890 = vpop.f32.mrb[0].mxu0
        %v891 = vadd.f32 0.0, %v890
        %v892 = vpop.f32.mrb[0].mxu0
        %v893 = vpop.f32.mrb[0].mxu0
        %v894 = vadd.f32 0.0, %v893
        %v895 = vpop.f32.mrb[0].mxu0
        %896 = vmatprep.mubr.bf16.mxu0 0
        %897 = vmatmul.mubr.bf16.gmra.mrb[0].mxu0 %v770
        %v898 = vpop.f32.mrb[0].mxu0
        %v899 = vadd.f32 0.0, %v898
        %v900 = vpop.f32.mrb[0].mxu0
        %v901 = vpop.f32.mrb[0].mxu0
        %v902 = vadd.f32 0.0, %v901
        %v903 = vpop.f32.mrb[0].mxu0
        %904 = vmatprep.mubr.bf16.mxu0 0
        %905 = vmatmul.mubr.bf16.gmra.mrb[0].mxu0 %v773
        %v906 = vpop.f32.mrb[0].mxu0
        %v907 = vadd.f32 0.0, %v906
        %v908 = vpop.f32.mrb[0].mxu0
        %v909 = vpop.f32.mrb[0].mxu0
        %v910 = vadd.f32 0.0, %v909
        %v911 = vpop.f32.mrb[0].mxu0
        %912 = vmatprep.mubr.bf16.mxu0 0
        %913 = vmatmul.mubr.bf16.gmra.mrb[0].mxu0 %v776
        %v914 = vpop.f32.mrb[0].mxu0
        %v915 = vadd.f32 0.0, %v914
        %v916 = vpop.f32.mrb[0].mxu0
        %v917 = vpop.f32.mrb[0].mxu0
        %v918 = vadd.f32 0.0, %v917
        %v919 = vpop.f32.mrb[0].mxu0
        %920 = vmatprep.mubr.bf16.mxu0 0
        %921 = vmatmul.mubr.bf16.gmra.mrb[0].mxu0 %v779
        %v922 = vpop.f32.mrb[0].mxu0
        %v923 = vadd.f32 0.0, %v922
        %v924 = vpop.f32.mrb[0].mxu0
        %v925 = vpop.f32.mrb[0].mxu0
        %v926 = vadd.f32 0.0, %v925
        %v927 = vpop.f32.mrb[0].mxu0
        %928 = vmatprep.mubr.bf16.mxu0 0
        %929 = vmatmul.mubr.bf16.gmra.mrb[0].mxu0 %v782
        %v930 = vpop.f32.mrb[0].mxu0
        %v931 = vadd.f32 0.0, %v930
        %v932 = vpop.f32.mrb[0].mxu0
        %v933 = vpop.f32.mrb[0].mxu0
        %v934 = vadd.f32 0.0, %v933
        %v935 = vpop.f32.mrb[0].mxu0
        %936 = vmatprep.mubr.bf16.mxu0 0
        %937 = vmatmul.mubr.bf16.gmra.mrb[0].mxu0 %v785
        %v938 = vpop.f32.mrb[0].mxu0
        %v939 = vadd.f32 0.0, %v938
        %v940 = vpop.f32.mrb[0].mxu0
        %v941 = vpop.f32.mrb[0].mxu0
        %v942 = vadd.f32 0.0, %v941
        %v943 = vpop.f32.mrb[0].mxu0
        %944 = vmatprep.mubr.bf16.mxu0 0
        %945 = vmatmul.mubr.bf16.gmra.mrb[0].mxu0 %v788
        %v946 = vpop.f32.mrb[0].mxu0
        %v947 = vadd.f32 0.0, %v946
        %v948 = vpop.f32.mrb[0].mxu0
        %v949 = vpop.f32.mrb[0].mxu0
        %v950 = vadd.f32 0.0, %v949
        %v951 = vpop.f32.mrb[0].mxu0
        %952 = vmatprep.mubr.bf16.mxu0 0
        %953 = vmatmul.mubr.bf16.gmra.mrb[0].mxu0 %v791
        %v954 = vpop.f32.mrb[0].mxu0
        %v955 = vadd.f32 0.0, %v954
        %v956 = vpop.f32.mrb[0].mxu0
        %v957 = vpop.f32.mrb[0].mxu0
        %v958 = vadd.f32 0.0, %v957
        %v959 = vpop.f32.mrb[0].mxu0
        %960 = vmatprep.mubr.bf16.mxu0 0
        %961 = vmatmul.mubr.bf16.gmra.mrb[0].mxu0 %v794
        %v962 = vpop.f32.mrb[0].mxu0
        %v963 = vadd.f32 0.0, %v962
        %v964 = vpop.f32.mrb[0].mxu0
        %v965 = vpop.f32.mrb[0].mxu0
        %v966 = vadd.f32 0.0, %v965
        %v967 = vpop.f32.mrb[0].mxu0
        %968 = vdwg.mxu0
        %vm969 = vcmask 523264
        %v970 = vsel %vm969, %v843, -inf
        %971 = vmax.xlane.f32.xlu0 %v970
        %v972 = vpop.xlane.xlu0 %971
        %v973 = vsel %vm969, %v846, -inf
        %974 = vmax.xlane.f32.xlu0 %v973
        %v975 = vpop.xlane.xlu0 %974
        %v976 = vsel %vm969, %v851, -inf
        %977 = vmax.xlane.f32.xlu0 %v976
        %v978 = vpop.xlane.xlu0 %977
        %v979 = vsel %vm969, %v854, -inf
        %980 = vmax.xlane.f32.xlu0 %v979
        %v981 = vpop.xlane.xlu0 %980
        %v982 = vsel %vm969, %v859, -inf
        %983 = vmax.xlane.f32.xlu0 %v982
        %v984 = vpop.xlane.xlu0 %983
        %v985 = vsel %vm969, %v862, -inf
        %986 = vmax.xlane.f32.xlu0 %v985
        %v987 = vpop.xlane.xlu0 %986
        %v988 = vsel %vm969, %v867, -inf
        %989 = vmax.xlane.f32.xlu0 %v988
        %v990 = vpop.xlane.xlu0 %989
        %v991 = vsel %vm969, %v870, -inf
        %992 = vmax.xlane.f32.xlu0 %v991
        %v993 = vpop.xlane.xlu0 %992
        %v994 = vsel %vm969, %v875, -inf
        %995 = vmax.xlane.f32.xlu0 %v994
        %v996 = vpop.xlane.xlu0 %995
        %v997 = vsel %vm969, %v878, -inf
        %998 = vmax.xlane.f32.xlu0 %v997
        %v999 = vpop.xlane.xlu0 %998
        %v1000 = vsel %vm969, %v883, -inf
        %1001 = vmax.xlane.f32.xlu0 %v1000
        %v1002 = vpop.xlane.xlu0 %1001
        %v1003 = vsel %vm969, %v886, -inf
        %1004 = vmax.xlane.f32.xlu0 %v1003
        %v1005 = vpop.xlane.xlu0 %1004
        %v1006 = vsel %vm969, %v891, -inf
        %1007 = vmax.xlane.f32.xlu0 %v1006
        %v1008 = vpop.xlane.xlu0 %1007
        %v1009 = vsel %vm969, %v894, -inf
        %1010 = vmax.xlane.f32.xlu0 %v1009
        %v1011 = vpop.xlane.xlu0 %1010
        %v1012 = vsel %vm969, %v899, -inf
        %1013 = vmax.xlane.f32.xlu0 %v1012
        %v1014 = vpop.xlane.xlu0 %1013
        %v1015 = vsel %vm969, %v902, -inf
        %1016 = vmax.xlane.f32.xlu0 %v1015
        %v1017 = vpop.xlane.xlu0 %1016
        %v1018 = vsel %vm969, %v907, -inf
        %1019 = vmax.xlane.f32.xlu0 %v1018
        %v1020 = vpop.xlane.xlu0 %1019
        %v1021 = vsel %vm969, %v910, -inf
        %1022 = vmax.xlane.f32.xlu0 %v1021
        %v1023 = vpop.xlane.xlu0 %1022
        %v1024 = vsel %vm969, %v915, -inf
        %1025 = vmax.xlane.f32.xlu0 %v1024
        %v1026 = vpop.xlane.xlu0 %1025
        %v1027 = vsel %vm969, %v918, -inf
        %1028 = vmax.xlane.f32.xlu0 %v1027
        %v1029 = vpop.xlane.xlu0 %1028
        %v1030 = vsel %vm969, %v923, -inf
        %1031 = vmax.xlane.f32.xlu0 %v1030
        %v1032 = vpop.xlane.xlu0 %1031
        %v1033 = vsel %vm969, %v926, -inf
        %1034 = vmax.xlane.f32.xlu0 %v1033
        %v1035 = vpop.xlane.xlu0 %1034
        %v1036 = vsel %vm969, %v931, -inf
        %1037 = vmax.xlane.f32.xlu0 %v1036
        %v1038 = vpop.xlane.xlu0 %1037
        %v1039 = vsel %vm969, %v934, -inf
        %1040 = vmax.xlane.f32.xlu0 %v1039
        %v1041 = vpop.xlane.xlu0 %1040
        %v1042 = vsel %vm969, %v939, -inf
        %1043 = vmax.xlane.f32.xlu0 %v1042
        %v1044 = vpop.xlane.xlu0 %1043
        %v1045 = vsel %vm969, %v942, -inf
        %1046 = vmax.xlane.f32.xlu0 %v1045
        %v1047 = vpop.xlane.xlu0 %1046
        %v1048 = vsel %vm969, %v947, -inf
        %1049 = vmax.xlane.f32.xlu0 %v1048
        %v1050 = vpop.xlane.xlu0 %1049
        %v1051 = vsel %vm969, %v950, -inf
        %1052 = vmax.xlane.f32.xlu0 %v1051
        %v1053 = vpop.xlane.xlu0 %1052
        %v1054 = vsel %vm969, %v955, -inf
        %1055 = vmax.xlane.f32.xlu0 %v1054
        %v1056 = vpop.xlane.xlu0 %1055
        %v1057 = vsel %vm969, %v958, -inf
        %1058 = vmax.xlane.f32.xlu0 %v1057
        %v1059 = vpop.xlane.xlu0 %1058
        %v1060 = vsel %vm969, %v963, -inf
        %1061 = vmax.xlane.f32.xlu0 %v1060
        %v1062 = vpop.xlane.xlu0 %1061
        %v1063 = vsel %vm969, %v966, -inf
        %1064 = vmax.xlane.f32.xlu0 %v1063
        %v1065 = vpop.xlane.xlu0 %1064
        %v1066 = vsub.f32 %v843, %v972
        %v1067 = vsub.f32 %v846, %v975
        %v1068 = vsub.f32 %v851, %v978
        %v1069 = vsub.f32 %v854, %v981
        %v1070 = vsub.f32 %v859, %v984
        %v1071 = vsub.f32 %v862, %v987
        %v1072 = vsub.f32 %v867, %v990
        %v1073 = vsub.f32 %v870, %v993
        %v1074 = vsub.f32 %v875, %v996
        %v1075 = vsub.f32 %v878, %v999
        %v1076 = vsub.f32 %v883, %v1002
        %v1077 = vsub.f32 %v886, %v1005
        %v1078 = vsub.f32 %v891, %v1008
        %v1079 = vsub.f32 %v894, %v1011
        %v1080 = vsub.f32 %v899, %v1014
        %v1081 = vsub.f32 %v902, %v1017
        %v1082 = vsub.f32 %v907, %v1020
        %v1083 = vsub.f32 %v910, %v1023
        %v1084 = vsub.f32 %v915, %v1026
        %v1085 = vsub.f32 %v918, %v1029
        %v1086 = vsub.f32 %v923, %v1032
        %v1087 = vsub.f32 %v926, %v1035
        %v1088 = vsub.f32 %v931, %v1038
        %v1089 = vsub.f32 %v934, %v1041
        %v1090 = vsub.f32 %v939, %v1044
        %v1091 = vsub.f32 %v942, %v1047
        %v1092 = vsub.f32 %v947, %v1050
        %v1093 = vsub.f32 %v950, %v1053
        %v1094 = vsub.f32 %v955, %v1056
        %v1095 = vsub.f32 %v958, %v1059
        %v1096 = vsub.f32 %v963, %v1062
        %v1097 = vsub.f32 %v966, %v1065
        %v1098 = vmul.f32 %v1066, 1.442695
        %v1099 = vpow.pop %v1098
        %v1100 = vmul.f32 %v1067, 1.442695
        %v1101 = vpow.pop %v1100
        %v1102 = vmul.f32 %v1068, 1.442695
        %v1103 = vpow.pop %v1102
        %v1104 = vmul.f32 %v1069, 1.442695
        %v1105 = vpow.pop %v1104
        %v1106 = vmul.f32 %v1070, 1.442695
        %v1107 = vpow.pop %v1106
        %v1108 = vmul.f32 %v1071, 1.442695
        %v1109 = vpow.pop %v1108
        %v1110 = vmul.f32 %v1072, 1.442695
        %v1111 = vpow.pop %v1110
        %v1112 = vmul.f32 %v1073, 1.442695
        %v1113 = vpow.pop %v1112
        %v1114 = vmul.f32 %v1074, 1.442695
        %v1115 = vpow.pop %v1114
        %v1116 = vmul.f32 %v1075, 1.442695
        %v1117 = vpow.pop %v1116
        %v1118 = vmul.f32 %v1076, 1.442695
        %v1119 = vpow.pop %v1118
        %v1120 = vmul.f32 %v1077, 1.442695
        %v1121 = vpow.pop %v1120
        %v1122 = vmul.f32 %v1078, 1.442695
        %v1123 = vpow.pop %v1122
        %v1124 = vmul.f32 %v1079, 1.442695
        %v1125 = vpow.pop %v1124
        %v1126 = vmul.f32 %v1080, 1.442695
        %v1127 = vpow.pop %v1126
        %v1128 = vmul.f32 %v1081, 1.442695
        %v1129 = vpow.pop %v1128
        %v1130 = vmul.f32 %v1082, 1.442695
        %v1131 = vpow.pop %v1130
        %v1132 = vmul.f32 %v1083, 1.442695
        %v1133 = vpow.pop %v1132
        %v1134 = vmul.f32 %v1084, 1.442695
        %v1135 = vpow.pop %v1134
        %v1136 = vmul.f32 %v1085, 1.442695
        %v1137 = vpow.pop %v1136
        %v1138 = vmul.f32 %v1086, 1.442695
        %v1139 = vpow.pop %v1138
        %v1140 = vmul.f32 %v1087, 1.442695
        %v1141 = vpow.pop %v1140
        %v1142 = vmul.f32 %v1088, 1.442695
        %v1143 = vpow.pop %v1142
        %v1144 = vmul.f32 %v1089, 1.442695
        %v1145 = vpow.pop %v1144
        %v1146 = vmul.f32 %v1090, 1.442695
        %v1147 = vpow.pop %v1146
        %v1148 = vmul.f32 %v1091, 1.442695
        %v1149 = vpow.pop %v1148
        %v1150 = vmul.f32 %v1092, 1.442695
        %v1151 = vpow.pop %v1150
        %v1152 = vmul.f32 %v1093, 1.442695
        %v1153 = vpow.pop %v1152
        %v1154 = vmul.f32 %v1094, 1.442695
        %v1155 = vpow.pop %v1154
        %v1156 = vmul.f32 %v1095, 1.442695
        %v1157 = vpow.pop %v1156
        %v1158 = vmul.f32 %v1096, 1.442695
        %v1159 = vpow.pop %v1158
        %v1160 = vmul.f32 %v1097, 1.442695
        %v1161 = vpow.pop %v1160
        %v1162 = vsel %vm969, %v1099, 0.0
        %1163 = vadd.xlane.f32.xlu0 %v1162
        %v1164 = vpop.xlane.xlu0 %1163
        %v1165 = vsel %vm969, %v1101, 0.0
        %1166 = vadd.xlane.f32.xlu0 %v1165
        %v1167 = vpop.xlane.xlu0 %1166
        %v1168 = vsel %vm969, %v1103, 0.0
        %1169 = vadd.xlane.f32.xlu0 %v1168
        %v1170 = vpop.xlane.xlu0 %1169
        %v1171 = vsel %vm969, %v1105, 0.0
        %1172 = vadd.xlane.f32.xlu0 %v1171
        %v1173 = vpop.xlane.xlu0 %1172
        %v1174 = vsel %vm969, %v1107, 0.0
        %1175 = vadd.xlane.f32.xlu0 %v1174
        %v1176 = vpop.xlane.xlu0 %1175
        %v1177 = vsel %vm969, %v1109, 0.0
        %1178 = vadd.xlane.f32.xlu0 %v1177
        %v1179 = vpop.xlane.xlu0 %1178
        %v1180 = vsel %vm969, %v1111, 0.0
        %1181 = vadd.xlane.f32.xlu0 %v1180
        %v1182 = vpop.xlane.xlu0 %1181
        %v1183 = vsel %vm969, %v1113, 0.0
        %1184 = vadd.xlane.f32.xlu0 %v1183
        %v1185 = vpop.xlane.xlu0 %1184
        %v1186 = vsel %vm969, %v1115, 0.0
        %1187 = vadd.xlane.f32.xlu0 %v1186
        %v1188 = vpop.xlane.xlu0 %1187
        %v1189 = vsel %vm969, %v1117, 0.0
        %1190 = vadd.xlane.f32.xlu0 %v1189
        %v1191 = vpop.xlane.xlu0 %1190
        %v1192 = vsel %vm969, %v1119, 0.0
        %1193 = vadd.xlane.f32.xlu0 %v1192
        %v1194 = vpop.xlane.xlu0 %1193
        %v1195 = vsel %vm969, %v1121, 0.0
        %1196 = vadd.xlane.f32.xlu0 %v1195
        %v1197 = vpop.xlane.xlu0 %1196
        %v1198 = vsel %vm969, %v1123, 0.0
        %1199 = vadd.xlane.f32.xlu0 %v1198
        %v1200 = vpop.xlane.xlu0 %1199
        %v1201 = vsel %vm969, %v1125, 0.0
        %1202 = vadd.xlane.f32.xlu0 %v1201
        %v1203 = vpop.xlane.xlu0 %1202
        %v1204 = vsel %vm969, %v1127, 0.0
        %1205 = vadd.xlane.f32.xlu0 %v1204
        %v1206 = vpop.xlane.xlu0 %1205
        %v1207 = vsel %vm969, %v1129, 0.0
        %1208 = vadd.xlane.f32.xlu0 %v1207
        %v1209 = vpop.xlane.xlu0 %1208
        %v1210 = vsel %vm969, %v1131, 0.0
        %1211 = vadd.xlane.f32.xlu0 %v1210
        %v1212 = vpop.xlane.xlu0 %1211
        %v1213 = vsel %vm969, %v1133, 0.0
        %1214 = vadd.xlane.f32.xlu0 %v1213
        %v1215 = vpop.xlane.xlu0 %1214
        %v1216 = vsel %vm969, %v1135, 0.0
        %1217 = vadd.xlane.f32.xlu0 %v1216
        %v1218 = vpop.xlane.xlu0 %1217
        %v1219 = vsel %vm969, %v1137, 0.0
        %1220 = vadd.xlane.f32.xlu0 %v1219
        %v1221 = vpop.xlane.xlu0 %1220
        %v1222 = vsel %vm969, %v1139, 0.0
        %1223 = vadd.xlane.f32.xlu0 %v1222
        %v1224 = vpop.xlane.xlu0 %1223
        %v1225 = vsel %vm969, %v1141, 0.0
        %1226 = vadd.xlane.f32.xlu0 %v1225
        %v1227 = vpop.xlane.xlu0 %1226
        %v1228 = vsel %vm969, %v1143, 0.0
        %1229 = vadd.xlane.f32.xlu0 %v1228
        %v1230 = vpop.xlane.xlu0 %1229
        %v1231 = vsel %vm969, %v1145, 0.0
        %1232 = vadd.xlane.f32.xlu0 %v1231
        %v1233 = vpop.xlane.xlu0 %1232
        %v1234 = vsel %vm969, %v1147, 0.0
        %1235 = vadd.xlane.f32.xlu0 %v1234
        %v1236 = vpop.xlane.xlu0 %1235
        %v1237 = vsel %vm969, %v1149, 0.0
        %1238 = vadd.xlane.f32.xlu0 %v1237
        %v1239 = vpop.xlane.xlu0 %1238
        %v1240 = vsel %vm969, %v1151, 0.0
        %1241 = vadd.xlane.f32.xlu0 %v1240
        %v1242 = vpop.xlane.xlu0 %1241
        %v1243 = vsel %vm969, %v1153, 0.0
        %1244 = vadd.xlane.f32.xlu0 %v1243
        %v1245 = vpop.xlane.xlu0 %1244
        %v1246 = vsel %vm969, %v1155, 0.0
        %1247 = vadd.xlane.f32.xlu0 %v1246
        %v1248 = vpop.xlane.xlu0 %1247
        %v1249 = vsel %vm969, %v1157, 0.0
        %1250 = vadd.xlane.f32.xlu0 %v1249
        %v1251 = vpop.xlane.xlu0 %1250
        %v1252 = vsel %vm969, %v1159, 0.0
        %1253 = vadd.xlane.f32.xlu0 %v1252
        %v1254 = vpop.xlane.xlu0 %1253
        %v1255 = vsel %vm969, %v1161, 0.0
        %1256 = vadd.xlane.f32.xlu0 %v1255
        %v1257 = vpop.xlane.xlu0 %1256
        %v1258 = vpack.c.bf16 %v1101, %v1099
        %v1259 = vpack.c.bf16 %v1105, %v1103
        %v1260 = vpack.c.bf16 %v1109, %v1107
        %v1261 = vpack.c.bf16 %v1113, %v1111
        %v1262 = vpack.c.bf16 %v1117, %v1115
        %v1263 = vpack.c.bf16 %v1121, %v1119
        %v1264 = vpack.c.bf16 %v1125, %v1123
        %v1265 = vpack.c.bf16 %v1129, %v1127
        %v1266 = vpack.c.bf16 %v1133, %v1131
        %v1267 = vpack.c.bf16 %v1137, %v1135
        %v1268 = vpack.c.bf16 %v1141, %v1139
        %v1269 = vpack.c.bf16 %v1145, %v1143
        %v1270 = vpack.c.bf16 %v1149, %v1147
        %v1271 = vpack.c.bf16 %v1153, %v1151
        %v1272 = vpack.c.bf16 %v1157, %v1155
        %v1273 = vpack.c.bf16 %v1161, %v1159
        %v1274 = vpack.c.bf16 %v672, %v665
        %v1275 = vpack.c.bf16 %v686, %v679
        %v1276 = vpack.c.bf16 %v700, %v693
        %v1277 = vpack.c.bf16 %v714, %v707
        %1282 = vrot.lane.b32.xlu0 %v1274, 96
        %v1283 = vpop.permute.xlu0 %1282
        %1284 = vrot.lane.b32.xlu0 %v1275, 96
        %v1285 = vpop.permute.xlu0 %1284
        %1286 = vrot.lane.b32.xlu0 %v1276, 96
        %v1287 = vpop.permute.xlu0 %1286
        %1288 = vrot.lane.b32.xlu0 %v1277, 96
        %v1289 = vpop.permute.xlu0 %1288
        %v1295 = vsel %vm969, %v1258, 0
        %v1298 = vsel %vm969, %v1259, 0
        %v1301 = vsel %vm969, %v1260, 0
        %v1304 = vsel %vm969, %v1261, 0
        %v1307 = vsel %vm969, %v1262, 0
        %v1310 = vsel %vm969, %v1263, 0
        %v1313 = vsel %vm969, %v1264, 0
        %v1316 = vsel %vm969, %v1265, 0
        %v1319 = vsel %vm969, %v1266, 0
        %v1322 = vsel %vm969, %v1267, 0
        %v1325 = vsel %vm969, %v1268, 0
        %v1328 = vsel %vm969, %v1269, 0
        %v1331 = vsel %vm969, %v1270, 0
        %v1334 = vsel %vm969, %v1271, 0
        %v1337 = vsel %vm969, %v1272, 0
        %v1340 = vsel %vm969, %v1273, 0
        %1342 = vmatprep.subr.bf16.mxu0 0
        %1343 = vmatpush1.bf16.msra.mxu0 %v1283
        %1344 = vmatprep.subr.bf16.mxu0 0
        %1345 = vmatpush1.bf16.msra.mxu0 %v1285
        %1346 = vmatprep.subr.bf16.mxu0 0
        %1347 = vmatpush1.bf16.msra.mxu0 %v1287
        %1348 = vmatprep.subr.bf16.mxu0 0
        %1349 = vmatpush1.bf16.msra.mxu0 %v1289
        %1350 = vmatprep.subr.bf16.mxu0 0
        %1351 = vmatpush1.bf16.msra.mxu0 0
        %1352 = vmatprep.subr.bf16.mxu0 0
        %1353 = vmatpush1.bf16.msra.mxu0 0
        %1354 = vmatprep.subr.bf16.mxu0 0
        %1355 = vmatpush1.bf16.msra.mxu0 0
        %1356 = vmatprep.subr.bf16.mxu0 0
        %1357 = vmatpush1.bf16.msra.mxu0 0
        %1358 = vmatprep.subr.bf16.mxu0 0
        %1359 = vmatpush1.bf16.msra.mxu0 0
        %1360 = vmatprep.subr.bf16.mxu0 0
        %1361 = vmatpush1.bf16.msra.mxu0 0
        %1362 = vmatprep.subr.bf16.mxu0 0
        %1363 = vmatpush1.bf16.msra.mxu0 0
        %1364 = vmatprep.subr.bf16.mxu0 0
        %1365 = vmatpush1.bf16.msra.mxu0 0
        %1366 = vmatprep.subr.bf16.mxu0 0
        %1367 = vmatpush1.bf16.msra.mxu0 0
        %1368 = vmatprep.subr.bf16.mxu0 0
        %1369 = vmatpush1.bf16.msra.mxu0 0
        %1370 = vmatprep.subr.bf16.mxu0 0
        %1371 = vmatpush1.bf16.msra.mxu0 0
        %1372 = vmatprep.subr.bf16.mxu0 0
        %1373 = vmatpush1.bf16.msra.mxu0 0
        %1374 = vmatprep.mubr.bf16.mxu0 0
        %1375 = vmatmul.mubr.bf16.gmra.mrb[0].mxu0 %v1295
        %v1376 = vpop.f32.mrb[0].mxu0
        %v1377 = vadd.f32 0.0, %v1376
        %v1378 = vpop.f32.mrb[0].mxu0
        %v1379 = vpop.f32.mrb[0].mxu0
        %v1380 = vadd.f32 0.0, %v1379
        %v1381 = vpop.f32.mrb[0].mxu0
        %1382 = vmatprep.mubr.bf16.mxu0 0
        %1383 = vmatmul.mubr.bf16.gmra.mrb[0].mxu0 %v1298
        %v1384 = vpop.f32.mrb[0].mxu0
        %v1385 = vadd.f32 0.0, %v1384
        %v1386 = vpop.f32.mrb[0].mxu0
        %v1387 = vpop.f32.mrb[0].mxu0
        %v1388 = vadd.f32 0.0, %v1387
        %v1389 = vpop.f32.mrb[0].mxu0
        %1390 = vmatprep.mubr.bf16.mxu0 0
        %1391 = vmatmul.mubr.bf16.gmra.mrb[0].mxu0 %v1301
        %v1392 = vpop.f32.mrb[0].mxu0
        %v1393 = vadd.f32 0.0, %v1392
        %v1394 = vpop.f32.mrb[0].mxu0
        %v1395 = vpop.f32.mrb[0].mxu0
        %v1396 = vadd.f32 0.0, %v1395
        %v1397 = vpop.f32.mrb[0].mxu0
        %1398 = vmatprep.mubr.bf16.mxu0 0
        %1399 = vmatmul.mubr.bf16.gmra.mrb[0].mxu0 %v1304
        %v1400 = vpop.f32.mrb[0].mxu0
        %v1401 = vadd.f32 0.0, %v1400
        %v1402 = vpop.f32.mrb[0].mxu0
        %v1403 = vpop.f32.mrb[0].mxu0
        %v1404 = vadd.f32 0.0, %v1403
        %v1405 = vpop.f32.mrb[0].mxu0
        %1406 = vmatprep.mubr.bf16.mxu0 0
        %1407 = vmatmul.mubr.bf16.gmra.mrb[0].mxu0 %v1307
        %v1408 = vpop.f32.mrb[0].mxu0
        %v1409 = vadd.f32 0.0, %v1408
        %v1410 = vpop.f32.mrb[0].mxu0
        %v1411 = vpop.f32.mrb[0].mxu0
        %v1412 = vadd.f32 0.0, %v1411
        %v1413 = vpop.f32.mrb[0].mxu0
        %1414 = vmatprep.mubr.bf16.mxu0 0
        %1415 = vmatmul.mubr.bf16.gmra.mrb[0].mxu0 %v1310
        %v1416 = vpop.f32.mrb[0].mxu0
        %v1417 = vadd.f32 0.0, %v1416
        %v1418 = vpop.f32.mrb[0].mxu0
        %v1419 = vpop.f32.mrb[0].mxu0
        %v1420 = vadd.f32 0.0, %v1419
        %v1421 = vpop.f32.mrb[0].mxu0
        %1422 = vmatprep.mubr.bf16.mxu0 0
        %1423 = vmatmul.mubr.bf16.gmra.mrb[0].mxu0 %v1313
        %v1424 = vpop.f32.mrb[0].mxu0
        %v1425 = vadd.f32 0.0, %v1424
        %v1426 = vpop.f32.mrb[0].mxu0
        %v1427 = vpop.f32.mrb[0].mxu0
        %v1428 = vadd.f32 0.0, %v1427
        %v1429 = vpop.f32.mrb[0].mxu0
        %1430 = vmatprep.mubr.bf16.mxu0 0
        %1431 = vmatmul.mubr.bf16.gmra.mrb[0].mxu0 %v1316
        %v1432 = vpop.f32.mrb[0].mxu0
        %v1433 = vadd.f32 0.0, %v1432
        %v1434 = vpop.f32.mrb[0].mxu0
        %v1435 = vpop.f32.mrb[0].mxu0
        %v1436 = vadd.f32 0.0, %v1435
        %v1437 = vpop.f32.mrb[0].mxu0
        %1438 = vmatprep.mubr.bf16.mxu0 0
        %1439 = vmatmul.mubr.bf16.gmra.mrb[0].mxu0 %v1319
        %v1440 = vpop.f32.mrb[0].mxu0
        %v1441 = vadd.f32 0.0, %v1440
        %v1442 = vpop.f32.mrb[0].mxu0
        %v1443 = vpop.f32.mrb[0].mxu0
        %v1444 = vadd.f32 0.0, %v1443
        %v1445 = vpop.f32.mrb[0].mxu0
        %1446 = vmatprep.mubr.bf16.mxu0 0
        %1447 = vmatmul.mubr.bf16.gmra.mrb[0].mxu0 %v1322
        %v1448 = vpop.f32.mrb[0].mxu0
        %v1449 = vadd.f32 0.0, %v1448
        %v1450 = vpop.f32.mrb[0].mxu0
        %v1451 = vpop.f32.mrb[0].mxu0
        %v1452 = vadd.f32 0.0, %v1451
        %v1453 = vpop.f32.mrb[0].mxu0
        %1454 = vmatprep.mubr.bf16.mxu0 0
        %1455 = vmatmul.mubr.bf16.gmra.mrb[0].mxu0 %v1325
        %v1456 = vpop.f32.mrb[0].mxu0
        %v1457 = vadd.f32 0.0, %v1456
        %v1458 = vpop.f32.mrb[0].mxu0
        %v1459 = vpop.f32.mrb[0].mxu0
        %v1460 = vadd.f32 0.0, %v1459
        %v1461 = vpop.f32.mrb[0].mxu0
        %1462 = vmatprep.mubr.bf16.mxu0 0
        %1463 = vmatmul.mubr.bf16.gmra.mrb[0].mxu0 %v1328
        %v1464 = vpop.f32.mrb[0].mxu0
        %v1465 = vadd.f32 0.0, %v1464
        %v1466 = vpop.f32.mrb[0].mxu0
        %v1467 = vpop.f32.mrb[0].mxu0
        %v1468 = vadd.f32 0.0, %v1467
        %v1469 = vpop.f32.mrb[0].mxu0
        %1470 = vmatprep.mubr.bf16.mxu0 0
        %1471 = vmatmul.mubr.bf16.gmra.mrb[0].mxu0 %v1331
        %v1472 = vpop.f32.mrb[0].mxu0
        %v1473 = vadd.f32 0.0, %v1472
        %v1474 = vpop.f32.mrb[0].mxu0
        %v1475 = vpop.f32.mrb[0].mxu0
        %v1476 = vadd.f32 0.0, %v1475
        %v1477 = vpop.f32.mrb[0].mxu0
        %1478 = vmatprep.mubr.bf16.mxu0 0
        %1479 = vmatmul.mubr.bf16.gmra.mrb[0].mxu0 %v1334
        %v1480 = vpop.f32.mrb[0].mxu0
        %v1481 = vadd.f32 0.0, %v1480
        %v1482 = vpop.f32.mrb[0].mxu0
        %v1483 = vpop.f32.mrb[0].mxu0
        %v1484 = vadd.f32 0.0, %v1483
        %v1485 = vpop.f32.mrb[0].mxu0
        %1486 = vmatprep.mubr.bf16.mxu0 0
        %1487 = vmatmul.mubr.bf16.gmra.mrb[0].mxu0 %v1337
        %v1488 = vpop.f32.mrb[0].mxu0
        %v1489 = vadd.f32 0.0, %v1488
        %v1490 = vpop.f32.mrb[0].mxu0
        %v1491 = vpop.f32.mrb[0].mxu0
        %v1492 = vadd.f32 0.0, %v1491
        %v1493 = vpop.f32.mrb[0].mxu0
        %1494 = vmatprep.mubr.bf16.mxu0 0
        %1495 = vmatmul.mubr.bf16.gmra.mrb[0].mxu0 %v1340
        %v1496 = vpop.f32.mrb[0].mxu0
        %v1497 = vadd.f32 0.0, %v1496
        %v1498 = vpop.f32.mrb[0].mxu0
        %v1499 = vpop.f32.mrb[0].mxu0
        %v1500 = vadd.f32 0.0, %v1499
        %v1501 = vpop.f32.mrb[0].mxu0
        %1502 = vdwg.mxu0
        %v1503 = vrcp.pop %v1164
        %v1504 = vrcp.pop %v1167
        %v1505 = vrcp.pop %v1170
        %v1506 = vrcp.pop %v1173
        %v1507 = vrcp.pop %v1176
        %v1508 = vrcp.pop %v1179
        %v1509 = vrcp.pop %v1182
        %v1510 = vrcp.pop %v1185
        %v1511 = vrcp.pop %v1188
        %v1512 = vrcp.pop %v1191
        %v1513 = vrcp.pop %v1194
        %v1514 = vrcp.pop %v1197
        %v1515 = vrcp.pop %v1200
        %v1516 = vrcp.pop %v1203
        %v1517 = vrcp.pop %v1206
        %v1518 = vrcp.pop %v1209
        %v1519 = vrcp.pop %v1212
        %v1520 = vrcp.pop %v1215
        %v1521 = vrcp.pop %v1218
        %v1522 = vrcp.pop %v1221
        %v1523 = vrcp.pop %v1224
        %v1524 = vrcp.pop %v1227
        %v1525 = vrcp.pop %v1230
        %v1526 = vrcp.pop %v1233
        %v1527 = vrcp.pop %v1236
        %v1528 = vrcp.pop %v1239
        %v1529 = vrcp.pop %v1242
        %v1530 = vrcp.pop %v1245
        %v1531 = vrcp.pop %v1248
        %v1532 = vrcp.pop %v1251
        %v1533 = vrcp.pop %v1254
        %v1534 = vrcp.pop %v1257
        %v1535 = vmul.f32 %v1377, %v1503
        %v1536 = vmul.f32 %v1380, %v1504
        %v1537 = vmul.f32 %v1385, %v1505
        %v1538 = vmul.f32 %v1388, %v1506
        %v1539 = vmul.f32 %v1393, %v1507
        %v1540 = vmul.f32 %v1396, %v1508
        %v1541 = vmul.f32 %v1401, %v1509
        %v1542 = vmul.f32 %v1404, %v1510
        %v1543 = vmul.f32 %v1409, %v1511
        %v1544 = vmul.f32 %v1412, %v1512
        %v1545 = vmul.f32 %v1417, %v1513
        %v1546 = vmul.f32 %v1420, %v1514
        %v1547 = vmul.f32 %v1425, %v1515
        %v1548 = vmul.f32 %v1428, %v1516
        %v1549 = vmul.f32 %v1433, %v1517
        %v1550 = vmul.f32 %v1436, %v1518
        %v1551 = vmul.f32 %v1441, %v1519
        %v1552 = vmul.f32 %v1444, %v1520
        %v1553 = vmul.f32 %v1449, %v1521
        %v1554 = vmul.f32 %v1452, %v1522
        %v1555 = vmul.f32 %v1457, %v1523
        %v1556 = vmul.f32 %v1460, %v1524
        %v1557 = vmul.f32 %v1465, %v1525
        %v1558 = vmul.f32 %v1468, %v1526
        %v1559 = vmul.f32 %v1473, %v1527
        %v1560 = vmul.f32 %v1476, %v1528
        %v1561 = vmul.f32 %v1481, %v1529
        %v1562 = vmul.f32 %v1484, %v1530
        %v1563 = vmul.f32 %v1489, %v1531
        %v1564 = vmul.f32 %v1492, %v1532
        %v1565 = vmul.f32 %v1497, %v1533
        %v1566 = vmul.f32 %v1500, %v1534
        %v1567 = vpack.c.bf16 %v1536, %v1535
        %v1568 = vpack.c.bf16 %v1538, %v1537
        %v1569 = vpack.c.bf16 %v1540, %v1539
        %v1570 = vpack.c.bf16 %v1542, %v1541
        %v1571 = vpack.c.bf16 %v1544, %v1543
        %v1572 = vpack.c.bf16 %v1546, %v1545
        %v1573 = vpack.c.bf16 %v1548, %v1547
        %v1574 = vpack.c.bf16 %v1550, %v1549
        %v1575 = vpack.c.bf16 %v1552, %v1551
        %v1576 = vpack.c.bf16 %v1554, %v1553
        %v1577 = vpack.c.bf16 %v1556, %v1555
        %v1578 = vpack.c.bf16 %v1558, %v1557
        %v1579 = vpack.c.bf16 %v1560, %v1559
        %v1580 = vpack.c.bf16 %v1562, %v1561
        %v1581 = vpack.c.bf16 %v1564, %v1563
        %v1582 = vpack.c.bf16 %v1566, %v1565
        %v1583 = vld [vmem:[#allocation8] sm:$0xf]
        %v1584 = vld [vmem:[#allocation8 + $0x4] sm:$0xf]
        %v1585 = vld [vmem:[#allocation8 + $0x8] sm:$0xf]
        %v1586 = vld [vmem:[#allocation8 + $0xc] sm:$0xf]
        %v1587 = vld [vmem:[#allocation8 + $0x10] sm:$0xf]
        %v1588 = vld [vmem:[#allocation8 + $0x14] sm:$0xf]
        %v1589 = vld [vmem:[#allocation8 + $0x18] sm:$0xf]
        %v1590 = vld [vmem:[#allocation8 + $0x1c] sm:$0xf]
        %v1599 = vunpack.c.l.b16 %v1583
        %v1600 = vunpack.c.l.b16 %v1584
        %v1601 = vunpack.c.l.b16 %v1585
        %v1602 = vunpack.c.l.b16 %v1586
        %v1603 = vunpack.c.l.b16 %v1587
        %v1604 = vunpack.c.l.b16 %v1588
        %v1605 = vunpack.c.l.b16 %v1589
        %v1606 = vunpack.c.l.b16 %v1590
        %v1607 = vpack.c.b16 %v1600, %v1599
        %v1608 = vpack.c.b16 %v1602, %v1601
        %v1609 = vpack.c.b16 %v1604, %v1603
        %v1610 = vpack.c.b16 %v1606, %v1605
        %v1616 = vsel %vm969, %v1567, 0
        %v1619 = vsel %vm969, %v1568, 0
        %v1622 = vsel %vm969, %v1569, 0
        %v1625 = vsel %vm969, %v1570, 0
        %v1628 = vsel %vm969, %v1571, 0
        %v1631 = vsel %vm969, %v1572, 0
        %v1634 = vsel %vm969, %v1573, 0
        %v1637 = vsel %vm969, %v1574, 0
        %v1640 = vsel %vm969, %v1575, 0
        %v1643 = vsel %vm969, %v1576, 0
        %v1646 = vsel %vm969, %v1577, 0
        %v1649 = vsel %vm969, %v1578, 0
        %v1652 = vsel %vm969, %v1579, 0
        %v1655 = vsel %vm969, %v1580, 0
        %v1658 = vsel %vm969, %v1581, 0
        %v1661 = vsel %vm969, %v1582, 0
        %1663 = vmatprep.subr.bf16.mxu0 0
        %1664 = vmatpush1.bf16.msra.mxu0 %v1607
        %1665 = vmatprep.subr.bf16.mxu0 0
        %1666 = vmatpush1.bf16.msra.mxu0 %v1608
        %1667 = vmatprep.subr.bf16.mxu0 0
        %1668 = vmatpush1.bf16.msra.mxu0 %v1609
        %1669 = vmatprep.subr.bf16.mxu0 0
        %1670 = vmatpush1.bf16.msra.mxu0 %v1610
        %1671 = vmatprep.subr.bf16.mxu0 0
        %1672 = vmatpush1.bf16.msra.mxu0 0
        %1673 = vmatprep.subr.bf16.mxu0 0
        %1674 = vmatpush1.bf16.msra.mxu0 0
        %1675 = vmatprep.subr.bf16.mxu0 0
        %1676 = vmatpush1.bf16.msra.mxu0 0
        %1677 = vmatprep.subr.bf16.mxu0 0
        %1678 = vmatpush1.bf16.msra.mxu0 0
        %1679 = vmatprep.subr.bf16.mxu0 0
        %1680 = vmatpush1.bf16.msra.mxu0 0
        %1681 = vmatprep.subr.bf16.mxu0 0
        %1682 = vmatpush1.bf16.msra.mxu0 0
        %1683 = vmatprep.subr.bf16.mxu0 0
        %1684 = vmatpush1.bf16.msra.mxu0 0
        %1685 = vmatprep.subr.bf16.mxu0 0
        %1686 = vmatpush1.bf16.msra.mxu0 0
        %1687 = vmatprep.subr.bf16.mxu0 0
        %1688 = vmatpush1.bf16.msra.mxu0 0
        %1689 = vmatprep.subr.bf16.mxu0 0
        %1690 = vmatpush1.bf16.msra.mxu0 0
        %1691 = vmatprep.subr.bf16.mxu0 0
        %1692 = vmatpush1.bf16.msra.mxu0 0
        %1693 = vmatprep.subr.bf16.mxu0 0
        %1694 = vmatpush1.bf16.msra.mxu0 0
        %1695 = vmatprep.mubr.bf16.mxu0 0
        %1696 = vmatmul.mubr.bf16.gmra.mrb[0].mxu0 %v1616
        %v1697 = vpop.f32.mrb[0].mxu0
        %v1698 = vadd.f32 0.0, %v1697
        %v1699 = vpop.f32.mrb[0].mxu0
        %v1700 = vpop.f32.mrb[0].mxu0
        %v1701 = vadd.f32 0.0, %v1700
        %v1702 = vpop.f32.mrb[0].mxu0
        %1703 = vmatprep.mubr.bf16.mxu0 0
        %1704 = vmatmul.mubr.bf16.gmra.mrb[0].mxu0 %v1619
        %v1705 = vpop.f32.mrb[0].mxu0
        %v1706 = vadd.f32 0.0, %v1705
        %v1707 = vpop.f32.mrb[0].mxu0
        %v1708 = vpop.f32.mrb[0].mxu0
        %v1709 = vadd.f32 0.0, %v1708
        %v1710 = vpop.f32.mrb[0].mxu0
        %1711 = vmatprep.mubr.bf16.mxu0 0
        %1712 = vmatmul.mubr.bf16.gmra.mrb[0].mxu0 %v1622
        %v1713 = vpop.f32.mrb[0].mxu0
        %v1714 = vadd.f32 0.0, %v1713
        %v1715 = vpop.f32.mrb[0].mxu0
        %v1716 = vpop.f32.mrb[0].mxu0
        %v1717 = vadd.f32 0.0, %v1716
        %v1718 = vpop.f32.mrb[0].mxu0
        %1719 = vmatprep.mubr.bf16.mxu0 0
        %1720 = vmatmul.mubr.bf16.gmra.mrb[0].mxu0 %v1625
        %v1721 = vpop.f32.mrb[0].mxu0
        %v1722 = vadd.f32 0.0, %v1721
        %v1723 = vpop.f32.mrb[0].mxu0
        %v1724 = vpop.f32.mrb[0].mxu0
        %v1725 = vadd.f32 0.0, %v1724
        %v1726 = vpop.f32.mrb[0].mxu0
        %1727 = vmatprep.mubr.bf16.mxu0 0
        %1728 = vmatmul.mubr.bf16.gmra.mrb[0].mxu0 %v1628
        %v1729 = vpop.f32.mrb[0].mxu0
        %v1730 = vadd.f32 0.0, %v1729
        %v1731 = vpop.f32.mrb[0].mxu0
        %v1732 = vpop.f32.mrb[0].mxu0
        %v1733 = vadd.f32 0.0, %v1732
        %v1734 = vpop.f32.mrb[0].mxu0
        %1735 = vmatprep.mubr.bf16.mxu0 0
        %1736 = vmatmul.mubr.bf16.gmra.mrb[0].mxu0 %v1631
        %v1737 = vpop.f32.mrb[0].mxu0
        %v1738 = vadd.f32 0.0, %v1737
        %v1739 = vpop.f32.mrb[0].mxu0
        %v1740 = vpop.f32.mrb[0].mxu0
        %v1741 = vadd.f32 0.0, %v1740
        %v1742 = vpop.f32.mrb[0].mxu0
        %1743 = vmatprep.mubr.bf16.mxu0 0
        %1744 = vmatmul.mubr.bf16.gmra.mrb[0].mxu0 %v1634
        %v1745 = vpop.f32.mrb[0].mxu0
        %v1746 = vadd.f32 0.0, %v1745
        %v1747 = vpop.f32.mrb[0].mxu0
        %v1748 = vpop.f32.mrb[0].mxu0
        %v1749 = vadd.f32 0.0, %v1748
        %v1750 = vpop.f32.mrb[0].mxu0
        %1751 = vmatprep.mubr.bf16.mxu0 0
        %1752 = vmatmul.mubr.bf16.gmra.mrb[0].mxu0 %v1637
        %v1753 = vpop.f32.mrb[0].mxu0
        %v1754 = vadd.f32 0.0, %v1753
        %v1755 = vpop.f32.mrb[0].mxu0
        %v1756 = vpop.f32.mrb[0].mxu0
        %v1757 = vadd.f32 0.0, %v1756
        %v1758 = vpop.f32.mrb[0].mxu0
        %1759 = vmatprep.mubr.bf16.mxu0 0
        %1760 = vmatmul.mubr.bf16.gmra.mrb[0].mxu0 %v1640
        %v1761 = vpop.f32.mrb[0].mxu0
        %v1762 = vadd.f32 0.0, %v1761
        %v1763 = vpop.f32.mrb[0].mxu0
        %v1764 = vpop.f32.mrb[0].mxu0
        %v1765 = vadd.f32 0.0, %v1764
        %v1766 = vpop.f32.mrb[0].mxu0
        %1767 = vmatprep.mubr.bf16.mxu0 0
        %1768 = vmatmul.mubr.bf16.gmra.mrb[0].mxu0 %v1643
        %v1769 = vpop.f32.mrb[0].mxu0
        %v1770 = vadd.f32 0.0, %v1769
        %v1771 = vpop.f32.mrb[0].mxu0
        %v1772 = vpop.f32.mrb[0].mxu0
        %v1773 = vadd.f32 0.0, %v1772
        %v1774 = vpop.f32.mrb[0].mxu0
        %1775 = vmatprep.mubr.bf16.mxu0 0
        %1776 = vmatmul.mubr.bf16.gmra.mrb[0].mxu0 %v1646
        %v1777 = vpop.f32.mrb[0].mxu0
        %v1778 = vadd.f32 0.0, %v1777
        %v1779 = vpop.f32.mrb[0].mxu0
        %v1780 = vpop.f32.mrb[0].mxu0
        %v1781 = vadd.f32 0.0, %v1780
        %v1782 = vpop.f32.mrb[0].mxu0
        %1783 = vmatprep.mubr.bf16.mxu0 0
        %1784 = vmatmul.mubr.bf16.gmra.mrb[0].mxu0 %v1649
        %v1785 = vpop.f32.mrb[0].mxu0
        %v1786 = vadd.f32 0.0, %v1785
        %v1787 = vpop.f32.mrb[0].mxu0
        %v1788 = vpop.f32.mrb[0].mxu0
        %v1789 = vadd.f32 0.0, %v1788
        %v1790 = vpop.f32.mrb[0].mxu0
        %1791 = vmatprep.mubr.bf16.mxu0 0
        %1792 = vmatmul.mubr.bf16.gmra.mrb[0].mxu0 %v1652
        %v1793 = vpop.f32.mrb[0].mxu0
        %v1794 = vadd.f32 0.0, %v1793
        %v1795 = vpop.f32.mrb[0].mxu0
        %v1796 = vpop.f32.mrb[0].mxu0
        %v1797 = vadd.f32 0.0, %v1796
        %v1798 = vpop.f32.mrb[0].mxu0
        %1799 = vmatprep.mubr.bf16.mxu0 0
        %1800 = vmatmul.mubr.bf16.gmra.mrb[0].mxu0 %v1655
        %v1801 = vpop.f32.mrb[0].mxu0
        %v1802 = vadd.f32 0.0, %v1801
        %v1803 = vpop.f32.mrb[0].mxu0
        %v1804 = vpop.f32.mrb[0].mxu0
        %v1805 = vadd.f32 0.0, %v1804
        %v1806 = vpop.f32.mrb[0].mxu0
        %1807 = vmatprep.mubr.bf16.mxu0 0
        %1808 = vmatmul.mubr.bf16.gmra.mrb[0].mxu0 %v1658
        %v1809 = vpop.f32.mrb[0].mxu0
        %v1810 = vadd.f32 0.0, %v1809
        %v1811 = vpop.f32.mrb[0].mxu0
        %v1812 = vpop.f32.mrb[0].mxu0
        %v1813 = vadd.f32 0.0, %v1812
        %v1814 = vpop.f32.mrb[0].mxu0
        %1815 = vmatprep.mubr.bf16.mxu0 0
        %1816 = vmatmul.mubr.bf16.gmra.mrb[0].mxu0 %v1661
        %v1817 = vpop.f32.mrb[0].mxu0
        %v1818 = vadd.f32 0.0, %v1817
        %v1819 = vpop.f32.mrb[0].mxu0
        %v1820 = vpop.f32.mrb[0].mxu0
        %v1821 = vadd.f32 0.0, %v1820
        %v1822 = vpop.f32.mrb[0].mxu0
        %1823 = vdwg.mxu0
        %v1824 = vstv %s247
        %v1825 = vmul.f32 %v1824, %v1698
        %v1826 = vmul.f32 %v1824, %v1701
        %v1827 = vmul.f32 %v1824, %v1706
        %v1828 = vmul.f32 %v1824, %v1709
        %v1829 = vmul.f32 %v1824, %v1714
        %v1830 = vmul.f32 %v1824, %v1717
        %v1831 = vmul.f32 %v1824, %v1722
        %v1832 = vmul.f32 %v1824, %v1725
        %v1833 = vmul.f32 %v1824, %v1730
        %v1834 = vmul.f32 %v1824, %v1733
        %v1835 = vmul.f32 %v1824, %v1738
        %v1836 = vmul.f32 %v1824, %v1741
        %v1837 = vmul.f32 %v1824, %v1746
        %v1838 = vmul.f32 %v1824, %v1749
        %v1839 = vmul.f32 %v1824, %v1754
        %v1840 = vmul.f32 %v1824, %v1757
        %v1841 = vmul.f32 %v1824, %v1762
        %v1842 = vmul.f32 %v1824, %v1765
        %v1843 = vmul.f32 %v1824, %v1770
        %v1844 = vmul.f32 %v1824, %v1773
        %v1845 = vmul.f32 %v1824, %v1778
        %v1846 = vmul.f32 %v1824, %v1781
        %v1847 = vmul.f32 %v1824, %v1786
        %v1848 = vmul.f32 %v1824, %v1789
        %v1849 = vmul.f32 %v1824, %v1794
        %v1850 = vmul.f32 %v1824, %v1797
        %v1851 = vmul.f32 %v1824, %v1802
        %v1852 = vmul.f32 %v1824, %v1805
        %v1853 = vmul.f32 %v1824, %v1810
        %v1854 = vmul.f32 %v1824, %v1813
        %v1855 = vmul.f32 %v1824, %v1818
        %v1856 = vmul.f32 %v1824, %v1821
        %v1857 = vunpack.c.l.bf16 %v248
        %v1858 = vunpack.c.l.bf16 %v249
        %v1859 = vunpack.c.l.bf16 %v250
        %v1860 = vunpack.c.l.bf16 %v251
        %v1861 = vunpack.c.l.bf16 %v252
        %v1862 = vunpack.c.l.bf16 %v253
        %v1863 = vunpack.c.l.bf16 %v254
        %v1864 = vunpack.c.l.bf16 %v255
        %v1865 = vunpack.c.l.bf16 %v256
        %v1866 = vunpack.c.l.bf16 %v257
        %v1867 = vunpack.c.l.bf16 %v258
        %v1868 = vunpack.c.l.bf16 %v259
        %v1869 = vunpack.c.l.bf16 %v260
        %v1870 = vunpack.c.l.bf16 %v261
        %v1871 = vunpack.c.l.bf16 %v262
        %v1872 = vunpack.c.l.bf16 %v263
        %v1873 = vunpack.c.l.bf16 %v264
        %v1874 = vunpack.c.l.bf16 %v265
        %v1875 = vunpack.c.l.bf16 %v266
        %v1876 = vunpack.c.l.bf16 %v267
        %v1877 = vunpack.c.l.bf16 %v268
        %v1878 = vunpack.c.l.bf16 %v269
        %v1879 = vunpack.c.l.bf16 %v270
        %v1880 = vunpack.c.l.bf16 %v271
        %v1881 = vunpack.c.l.bf16 %v272
        %v1882 = vunpack.c.l.bf16 %v273
        %v1883 = vunpack.c.l.bf16 %v274
        %v1884 = vunpack.c.l.bf16 %v275
        %v1885 = vunpack.c.l.bf16 %v276
        %v1886 = vunpack.c.l.bf16 %v277
        %v1887 = vunpack.c.l.bf16 %v278
        %v1888 = vunpack.c.l.bf16 %v279
        %v1889 = vadd.f32 %v1825, %v1857
        %v1890 = vadd.f32 %v1826, %v1858
        %v1891 = vadd.f32 %v1827, %v1859
        %v1892 = vadd.f32 %v1828, %v1860
        %v1893 = vadd.f32 %v1829, %v1861
        %v1894 = vadd.f32 %v1830, %v1862
        %v1895 = vadd.f32 %v1831, %v1863
        %v1896 = vadd.f32 %v1832, %v1864
        %v1897 = vadd.f32 %v1833, %v1865
        %v1898 = vadd.f32 %v1834, %v1866
        %v1899 = vadd.f32 %v1835, %v1867
        %v1900 = vadd.f32 %v1836, %v1868
        %v1901 = vadd.f32 %v1837, %v1869
        %v1902 = vadd.f32 %v1838, %v1870
        %v1903 = vadd.f32 %v1839, %v1871
        %v1904 = vadd.f32 %v1840, %v1872
        %v1905 = vadd.f32 %v1841, %v1873
        %v1906 = vadd.f32 %v1842, %v1874
        %v1907 = vadd.f32 %v1843, %v1875
        %v1908 = vadd.f32 %v1844, %v1876
        %v1909 = vadd.f32 %v1845, %v1877
        %v1910 = vadd.f32 %v1846, %v1878
        %v1911 = vadd.f32 %v1847, %v1879
        %v1912 = vadd.f32 %v1848, %v1880
        %v1913 = vadd.f32 %v1849, %v1881
        %v1914 = vadd.f32 %v1850, %v1882
        %v1915 = vadd.f32 %v1851, %v1883
        %v1916 = vadd.f32 %v1852, %v1884
        %v1917 = vadd.f32 %v1853, %v1885
        %v1918 = vadd.f32 %v1854, %v1886
        %v1919 = vadd.f32 %v1855, %v1887
        %v1920 = vadd.f32 %v1856, %v1888
        %1921 = vst [vmem:[%s245] sm:$0xff] %v1889
        %1922 = vst [vmem:[%s245 + $0x8] sm:$0xff] %v1890
        %1923 = vst [vmem:[%s245 + $0x10] sm:$0xff] %v1891
        %1924 = vst [vmem:[%s245 + $0x18] sm:$0xff] %v1892
        %1925 = vst [vmem:[%s245 + $0x20] sm:$0xff] %v1893
        %1926 = vst [vmem:[%s245 + $0x28] sm:$0xff] %v1894
        %1927 = vst [vmem:[%s245 + $0x30] sm:$0xff] %v1895
        %1928 = vst [vmem:[%s245 + $0x38] sm:$0xff] %v1896
        %1929 = vst [vmem:[%s245 + $0x40] sm:$0xff] %v1897
        %1930 = vst [vmem:[%s245 + $0x48] sm:$0xff] %v1898
        %1931 = vst [vmem:[%s245 + $0x50] sm:$0xff] %v1899
        %1932 = vst [vmem:[%s245 + $0x58] sm:$0xff] %v1900
        %1933 = vst [vmem:[%s245 + $0x60] sm:$0xff] %v1901
        %1934 = vst [vmem:[%s245 + $0x68] sm:$0xff] %v1902
        %1935 = vst [vmem:[%s245 + $0x70] sm:$0xff] %v1903
        %1936 = vst [vmem:[%s245 + $0x78] sm:$0xff] %v1904
        %1937 = vst [vmem:[%s245 + $0x80] sm:$0xff] %v1905
        %1938 = vst [vmem:[%s245 + $0x88] sm:$0xff] %v1906
        %1939 = vst [vmem:[%s245 + $0x90] sm:$0xff] %v1907
        %1940 = vst [vmem:[%s245 + $0x98] sm:$0xff] %v1908
        %1941 = vst [vmem:[%s245 + $0xa0] sm:$0xff] %v1909
        %1942 = vst [vmem:[%s245 + $0xa8] sm:$0xff] %v1910
        %1943 = vst [vmem:[%s245 + $0xb0] sm:$0xff] %v1911
        %1944 = vst [vmem:[%s245 + $0xb8] sm:$0xff] %v1912
        %1945 = vst [vmem:[%s245 + $0xc0] sm:$0xff] %v1913
        %1946 = vst [vmem:[%s245 + $0xc8] sm:$0xff] %v1914
        %1947 = vst [vmem:[%s245 + $0xd0] sm:$0xff] %v1915
        %1948 = vst [vmem:[%s245 + $0xd8] sm:$0xff] %v1916
        %1949 = vst [vmem:[%s245 + $0xe0] sm:$0xff] %v1917
        %1950 = vst [vmem:[%s245 + $0xe8] sm:$0xff] %v1918
        %1951 = vst [vmem:[%s245 + $0xf0] sm:$0xff] %v1919
        %1952 = vst [vmem:[%s245 + $0xf8] sm:$0xff] %v1920
        %s1953 = sand.u32 %s120, 1
        %s1954 = scalar_lea.sflag [#allocation5], %s1953
        %s1955 = sand.u32 %s120, 1
        %s1956 = smul.addr %s1955, 256
        %s1957 = scalar_lea.vmem [#allocation9], %s1956
        // Predicated region
        $region49: #{tpu_custom_call.1} parent=35 // pred_check
          %p1958 = pneg %p130
        $region50: #{tpu_custom_call.1} parent=35 // pred_check_branch
          %1960 = sbr.rel (%p1958) target = $region52
        $region51: #{tpu_custom_call.1} parent=35 // pred_region
          %s1962 = ssub.s32 4096, 4096
          %1963 = vsyncadd %s1954, %s1962
          %s1964 = smul.addr %s23, 32
          %s1965 = smul.addr %s1964, 128
          %s1966 = scalar_lea.hbm %s4, %s1965
          %s1967 = sshll.u32 %s1957, 4
          %s1968 = int_to_ptr.vmem [resolvable:$true] %s1967
          %1973 = dma.vmem_to_hbm [thread:$0]  %s1968, 4096, %s1966, %s1954, 128, 128, 8
        $region52: #{tpu_custom_call.1} parent=35 // pred_fallthru
          _
      $region36: #{tpu_custom_call.1} parent=5 // pred_fallthru
        _
      %p1974 = scmp.le.s32.totalorder 2, %s18
      // Predicated region
      $region53: #{tpu_custom_call.1} parent=5 // pred_check
        %p1975 = pneg %p1974
      $region54: #{tpu_custom_call.1} parent=5 // pred_check_branch
        %1977 = sbr.rel (%p1975) target = $region56
      $region55: #{tpu_custom_call.1} parent=5 // pred_region
        %s1978 = ssub.s32 %s18, 2
        // Predicated region
        $region57: #{tpu_custom_call.1} parent=55 // pred_check
          %p1979 = pneg %p136
        $region58: #{tpu_custom_call.1} parent=55 // pred_check_branch
          %1981 = sbr.rel (%p1979) target = $region60
        $region59: #{tpu_custom_call.1} parent=55 // pred_region
          %s1982 = sand.u32 %s121, 1
          %s1983 = scalar_lea.sflag [#allocation5], %s1982
          %s1984 = sand.u32 %s121, 1
          %s1985 = smul.addr %s1984, 256
          %s1986 = scalar_lea.vmem [#allocation9], %s1985
          %1987 = dma.done %s1983, 4096
        $region60: #{tpu_custom_call.1} parent=55 // pred_fallthru
          _
      $region56: #{tpu_custom_call.1} parent=5 // pred_fallthru
        _
    $region6: #{tpu_custom_call.1} parent=1 // loop_footer
      %s22 = sadd.s32 1, %s18
    $region7: #{tpu_custom_call.1} parent=1 // loop_footer_branch
      %17 = sbr.rel target = $region3
    $region8: #{tpu_custom_call.1} parent=1 // loop_exit
      _
    %1988 = vsyncpa [#allocation4], 1
    %s1989 = scalar_lea.sflag [#allocation4], 1
    %1990 = vsyncpa %s1989, 1
    %1991 = vsyncpa [#allocation7], 1
    %1992 = vsyncpa [#allocation5], 1
    %s1993 = scalar_lea.sflag [#allocation5], 1
    %1994 = vsyncpa %s1993, 1

</llo_original>
